<compile_context>
chip_gen: v5e
topology: v5e:2x2
jax: 0.10.0
libtpu: 0.0.40
codegen_flags: <defaults>
</compile_context>

<pallas_src>
import math

import jax
import jax.numpy as jnp
from jax import lax
from jax.experimental import pallas as pl
from jax.experimental.pallas import tpu as pltpu

D_OUT = 512          # Projection output dim (fixed to 512 in the module)
LN_EPS = 1e-5        # torch.nn.LayerNorm default eps
B_TILE = 8           # batch tile (sublane-aligned)
ROWS_TILE = 8        # image rows per spatial grid step (raise for real sizes)


def _erf(x):
    # Abramowitz & Stegun 7.1.26 polynomial (|err| <= 1.5e-7).  Runs once, in
    # the pl.when tail, on a (B_TILE, 512) tile.
    a1, a2, a3, a4, a5 = 0.254829592, -0.284496736, 1.421413741, -1.453152027, 1.061405429
    p = 0.3275911
    ax = jnp.abs(x)
    t = 1.0 / (1.0 + p * ax)
    poly = ((((a5 * t + a4) * t + a3) * t + a2) * t + a1) * t
    y = 1.0 - poly * jnp.exp(-ax * ax)
    return jnp.where(x >= 0.0, y, -y)


def _make_kernel(inv_hw):
    def kernel(x_ref, w_all_ref, w_top_ref, w_bot_ref, w1_ref, w2_ref,
               gamma_ref, beta_ref, out_ref, pool_acc):
        t = pl.program_id(1)
        n_t = pl.num_programs(1)

        x = x_ref[...]                              # (B_TILE, rows_t, W*Cin) f32
        rowsum = jnp.sum(x, axis=1)                 # (B_TILE, W*Cin)

        # Init the pooled-sum accumulator on the first spatial tile.  The global
        # first image row misses its kh=2 taps ('same' zero padding), so that
        # correction is folded straight into the init.
        @pl.when(t == 0)
        def _():
            pool_acc[...] = -jnp.dot(x[:, 0, :], w_bot_ref[...],
                                     preferred_element_type=jnp.float32)

        # conv + global-average-pool with the spatial sum hoisted before the
        # matmul: one (B_TILE, W*Cin) @ (W*Cin, Cout) matmul per tile.
        pool_acc[...] += jnp.dot(rowsum, w_all_ref[...],
                                 preferred_element_type=jnp.float32)

        # Tail: last-row correction (no kh=0 taps) + Projection + LayerNorm + L2.
        @pl.when(t == n_t - 1)
        def _():
            pool_sum = pool_acc[...] - jnp.dot(x[:, -1, :], w_top_ref[...],
                                               preferred_element_type=jnp.float32)
            pooled = pool_sum * inv_hw                    # adaptive_avg_pool2d((1,1))
            embed1 = jnp.dot(pooled.astype(jnp.bfloat16), w1_ref[...],
                             preferred_element_type=jnp.float32)
            gelu1 = 0.5 * embed1 * (1.0 + _erf(embed1 * 0.7071067811865476))
            embed2 = jnp.dot(gelu1.astype(jnp.bfloat16), w2_ref[...],
                             preferred_element_type=jnp.float32)
            s = embed1 + embed2                 # Dropout(p=0.5) -> identity (eval)
            mean = jnp.mean(s, axis=-1, keepdims=True)
            var = jnp.mean((s - mean) ** 2, axis=-1, keepdims=True)
            normed = (s - mean) * lax.rsqrt(var + LN_EPS)
            embeds = normed * gamma_ref[...] + beta_ref[...]
            l2 = jnp.sqrt(jnp.sum(embeds * embeds, axis=-1, keepdims=True))
            out_ref[...] = (embeds / jnp.maximum(l2, 1e-12)).astype(out_ref.dtype)

    return kernel


def _fold_conv_weights(w_conv, W):
    """Fold 3x3 'same' conv + global average pool into (W*Cin, Cout) matrices.

    Column j of the input receives tap kw iff its shifted output column is in
    bounds: kw=0 -> j < W-1, kw=1 -> always, kw=2 -> j >= 1.  Rows are handled
    analogously in-kernel via the first/last-row correction matmuls.
    """
    Cin, Cout = w_conv.shape[2], w_conv.shape[3]
    j = jnp.arange(W)
    valid = jnp.stack([j < W - 1,
                       jnp.ones((W,), dtype=jnp.bool_),
                       j >= 1], axis=1).astype(jnp.float32)          # (W, 3)
    # per_kh[kh, j, ci, co] = sum_kw valid[j, kw] * w_conv[kh, kw, ci, co]
    per_kh = jnp.einsum('jk,hkio->hjio', valid, w_conv)               # (3, W, Cin, Cout)
    w_all = per_kh.sum(axis=0).reshape(W * Cin, Cout)
    w_top = per_kh[0].reshape(W * Cin, Cout)     # subtract for global last row
    w_bot = per_kh[2].reshape(W * Cin, Cout)     # subtract for global first row
    return w_all, w_top, w_bot


def init_params(key, in_channels, num_features):
    k1, k2, k3 = jax.random.split(key, 3)
    w_conv = jax.random.normal(k1, (3, 3, in_channels, num_features),
                               jnp.float32) / math.sqrt(9 * in_channels)
    # torch Linear stores (out, in); we store the transposed (in, out) layout.
    w1 = jax.random.normal(k2, (num_features, D_OUT), jnp.float32) / math.sqrt(num_features)
    w2 = jax.random.normal(k3, (D_OUT, D_OUT), jnp.float32) / math.sqrt(D_OUT)
    gamma = jnp.ones((1, D_OUT), jnp.float32)   # LayerNorm default init
    beta = jnp.zeros((1, D_OUT), jnp.float32)
    return dict(w_conv=w_conv, w1=w1, w2=w2, gamma=gamma, beta=beta)


def vision_encoder(image, params, rows_tile=ROWS_TILE):
    """image: (B, H, W, Cin) float32 NHWC -> (B, 512) L2-normalized embeddings."""
    B, H, W, Cin = image.shape
    w_conv = params["w_conv"]
    Cout = w_conv.shape[-1]
    assert H % rows_tile == 0 and rows_tile % 8 == 0, \
        "demo wrapper requires H % rows_tile == 0 and rows_tile % 8 == 0"

    n_t = H // rows_tile
    b_pad = pl.cdiv(B, B_TILE) * B_TILE
    n_b = b_pad // B_TILE

    # Only wrapper glue: free contiguous reshape to a lane-denser trailing dim
    # (W*Cin), plus a batch-tail zero pad.  No halo, no im2col, no extra pass.
    x = image.reshape(B, H, W * Cin)
    if b_pad != B:
        x = jnp.pad(x, ((0, b_pad - B), (0, 0), (0, 0)))

    w_all, w_top, w_bot = _fold_conv_weights(w_conv, W)
    w1 = params["w1"].astype(jnp.bfloat16)     # bf16 VMEM copies (f32 accumulation)
    w2 = params["w2"].astype(jnp.bfloat16)
    gamma, beta = params["gamma"], params["beta"]

    kernel = _make_kernel(1.0 / float(H * W))

    out = pl.pallas_call(
        kernel,
        out_shape=jax.ShapeDtypeStruct((b_pad, D_OUT), jnp.float32),
        grid=(n_b, n_t),
        in_specs=[
            pl.BlockSpec((B_TILE, rows_tile, W * Cin), lambda bi, ti: (bi, ti, 0)),
            pl.BlockSpec((W * Cin, Cout), lambda bi, ti: (0, 0)),
            pl.BlockSpec((W * Cin, Cout), lambda bi, ti: (0, 0)),
            pl.BlockSpec((W * Cin, Cout), lambda bi, ti: (0, 0)),
            pl.BlockSpec((Cout, D_OUT), lambda bi, ti: (0, 0)),
            pl.BlockSpec((D_OUT, D_OUT), lambda bi, ti: (0, 0)),
            pl.BlockSpec((1, D_OUT), lambda bi, ti: (0, 0)),
            pl.BlockSpec((1, D_OUT), lambda bi, ti: (0, 0)),
        ],
        # output block resident across the spatial reduction axis; written once.
        out_specs=pl.BlockSpec((B_TILE, D_OUT), lambda bi, ti: (bi, 0)),
        scratch_shapes=[pltpu.VMEM((B_TILE, Cout), jnp.float32)],
        compiler_params=pltpu.CompilerParams(
            dimension_semantics=("parallel", "arbitrary")),
    )(x, w_all, w_top, w_bot, w1, w2, gamma, beta)
    return out[:B]


def vision_encoder_ref(image, params):
    """Pure-JAX reference for cross-checking the kernel."""
    feat = lax.conv_general_dilated(
        image, params["w_conv"], window_strides=(1, 1), padding="SAME",
        dimension_numbers=("NHWC", "HWIO", "NHWC"))
    pooled = jnp.mean(feat, axis=(1, 2))                    # adaptive_avg_pool2d((1,1))
    embed1 = pooled @ params["w1"]
    embed2 = jax.nn.gelu(embed1, approximate=False) @ params["w2"]
    s = embed1 + embed2
    mean = jnp.mean(s, axis=-1, keepdims=True)
    var = jnp.mean((s - mean) ** 2, axis=-1, keepdims=True)
    embeds = (s - mean) / jnp.sqrt(var + LN_EPS) * params["gamma"] + params["beta"]
    return embeds / jnp.linalg.norm(embeds, axis=-1, keepdims=True)


if __name__ == "__main__":
    B, H, W, Cin = 2, 16, 16, 4
    num_features = 128  # synthetic backbone num_features (== projection d_in)

    key = jax.random.PRNGKey(0)
    k_img, k_par = jax.random.split(key)
    image = jax.random.normal(k_img, (B, H, W, Cin), jnp.float32)
    params = init_params(k_par, Cin, num_features)

    out = jax.block_until_ready(vision_encoder(image, params))
    ref = vision_encoder_ref(image, params)

    assert out.shape == (B, D_OUT)
    assert bool(jnp.all(jnp.isfinite(out)))
    # unit-norm rows
    assert bool(jnp.allclose(jnp.linalg.norm(out, axis=-1), 1.0, atol=1e-4))
    # matches pure-JAX reference (conv/pool path exact f32; only the projection
    # matmul operands are bf16, plus the erf polynomial)
    err = float(jnp.max(jnp.abs(out - ref)))
    assert err < 1e-2, err

    print("KERNEL_OK")
</pallas_src>

<mosaic_0001>
module attributes {stable_mosaic.version = 11 : i64} {
  func.func @kernel(%arg0: i32, %arg1: i32, %arg2: memref<8x8x64xf32, #tpu.memory_space<vmem>>, %arg3: memref<64x128xf32, #tpu.memory_space<vmem>>, %arg4: memref<64x128xf32, #tpu.memory_space<vmem>>, %arg5: memref<64x128xf32, #tpu.memory_space<vmem>>, %arg6: memref<128x512xbf16, #tpu.memory_space<vmem>>, %arg7: memref<512x512xbf16, #tpu.memory_space<vmem>>, %arg8: memref<1x512xf32, #tpu.memory_space<vmem>>, %arg9: memref<1x512xf32, #tpu.memory_space<vmem>>, %arg10: memref<8x512xf32, #tpu.memory_space<vmem>>, %arg11: memref<8x128xf32, #tpu.memory_space<vmem>>) attributes {dimension_semantics = [#tpu.dimension_semantics<parallel>, #tpu.dimension_semantics<arbitrary>], iteration_bounds = array<i64: 1, 2>, scalar_prefetch = 0 : i64, scratch_operands = 1 : i64, tpu.core_type = #tpu.core_type<tc>, window_params = [{transform_indices = @transform_0, window_bounds = array<i64: 8, 8, 64>}, {pipeline_mode = #tpu.pipeline_mode<synchronous>, transform_indices = @transform_1, window_bounds = array<i64: 64, 128>}, {pipeline_mode = #tpu.pipeline_mode<synchronous>, transform_indices = @transform_2, window_bounds = array<i64: 64, 128>}, {pipeline_mode = #tpu.pipeline_mode<synchronous>, transform_indices = @transform_3, window_bounds = array<i64: 64, 128>}, {pipeline_mode = #tpu.pipeline_mode<synchronous>, transform_indices = @transform_4, window_bounds = array<i64: 128, 512>}, {pipeline_mode = #tpu.pipeline_mode<synchronous>, transform_indices = @transform_5, window_bounds = array<i64: 512, 512>}, {pipeline_mode = #tpu.pipeline_mode<synchronous>, transform_indices = @transform_6, window_bounds = array<i64: 1, 512>}, {pipeline_mode = #tpu.pipeline_mode<synchronous>, transform_indices = @transform_7, window_bounds = array<i64: 1, 512>}, {transform_indices = @transform_8, window_bounds = array<i64: 8, 512>}]} {
    %c0 = arith.constant 0 : index
    %c0_0 = arith.constant 0 : index
    %c0_1 = arith.constant 0 : index
    %0 = vector.load %arg2[%c0, %c0_0, %c0_1] : memref<8x8x64xf32, #tpu.memory_space<vmem>>, vector<8x8x64xf32>
    %cst = arith.constant dense<0.000000e+00> : vector<8x64xf32>
    %1 = vector.multi_reduction <add>, %0, %cst [1] : vector<8x8x64xf32> to vector<8x64xf32>
    %c0_i32 = arith.constant 0 : i32
    %2 = arith.cmpi eq, %arg1, %c0_i32 : i32
    %3 = arith.extui %2 : i1 to i32
    %c0_i32_2 = arith.constant 0 : i32
    %4 = arith.cmpi ne, %3, %c0_i32_2 : i32
    scf.if %4 {
      %13 = vector.extract_strided_slice %0 {offsets = [0, 0, 0], sizes = [8, 1, 64], strides = [1, 1, 1]} : vector<8x8x64xf32> to vector<8x1x64xf32>
      %14 = vector.shape_cast %13 : vector<8x1x64xf32> to vector<8x64xf32>
      %c0_11 = arith.constant 0 : index
      %c0_12 = arith.constant 0 : index
      %15 = vector.load %arg5[%c0_11, %c0_12] : memref<64x128xf32, #tpu.memory_space<vmem>>, vector<64x128xf32>
      %cst_13 = arith.constant dense<0.000000e+00> : vector<8x128xf32>
      %16 = tpu.matmul %14, %15, %cst_13 {dimension_numbers = #tpu.dot_dimension_numbers<[1], [0], [0], [1], [0, 0, 1, 1], [], []>} : vector<8x64xf32>, vector<64x128xf32>, vector<8x128xf32> -> vector<8x128xf32>
      %cst_14 = arith.constant 0.000000e+00 : f32
      %17 = vector.broadcast %cst_14 : f32 to vector<8x128xf32>
      %18 = arith.subf %17, %16 : vector<8x128xf32>
      %c0_15 = arith.constant 0 : index
      %c0_16 = arith.constant 0 : index
      %19 = vector.load %arg11[%c0_15, %c0_16] : memref<8x128xf32, #tpu.memory_space<vmem>>, vector<8x128xf32>
      tpu.vector_store %arg11[%c0_15, %c0_16], %18 {strides = array<i32>} : memref<8x128xf32, #tpu.memory_space<vmem>>, vector<8x128xf32>,
    } else {
    }
    %c0_3 = arith.constant 0 : index
    %c0_4 = arith.constant 0 : index
    %5 = vector.load %arg11[%c0_3, %c0_4] : memref<8x128xf32, #tpu.memory_space<vmem>>, vector<8x128xf32>
    %c0_5 = arith.constant 0 : index
    %c0_6 = arith.constant 0 : index
    %6 = vector.load %arg3[%c0_5, %c0_6] : memref<64x128xf32, #tpu.memory_space<vmem>>, vector<64x128xf32>
    %cst_7 = arith.constant dense<0.000000e+00> : vector<8x128xf32>
    %7 = tpu.matmul %1, %6, %cst_7 {dimension_numbers = #tpu.dot_dimension_numbers<[1], [0], [0], [1], [0, 0, 1, 1], [], []>} : vector<8x64xf32>, vector<64x128xf32>, vector<8x128xf32> -> vector<8x128xf32>
    %8 = arith.addf %5, %7 : vector<8x128xf32>
    %c0_8 = arith.constant 0 : index
    %c0_9 = arith.constant 0 : index
    %9 = vector.load %arg11[%c0_8, %c0_9] : memref<8x128xf32, #tpu.memory_space<vmem>>, vector<8x128xf32>
    tpu.vector_store %arg11[%c0_8, %c0_9], %8 {strides = array<i32>} : memref<8x128xf32, #tpu.memory_space<vmem>>, vector<8x128xf32>,
    %c1_i32 = arith.constant 1 : i32
    %10 = arith.cmpi eq, %arg1, %c1_i32 : i32
    %11 = arith.extui %10 : i1 to i32
    %c0_i32_10 = arith.constant 0 : i32
    %12 = arith.cmpi ne, %11, %c0_i32_10 : i32
    scf.if %12 {
      %c0_11 = arith.constant 0 : index
      %c0_12 = arith.constant 0 : index
      %13 = vector.load %arg11[%c0_11, %c0_12] : memref<8x128xf32, #tpu.memory_space<vmem>>, vector<8x128xf32>
      %14 = vector.extract_strided_slice %0 {offsets = [0, 7, 0], sizes = [8, 1, 64], strides = [1, 1, 1]} : vector<8x8x64xf32> to vector<8x1x64xf32>
      %15 = vector.shape_cast %14 : vector<8x1x64xf32> to vector<8x64xf32>
      %c0_13 = arith.constant 0 : index
      %c0_14 = arith.constant 0 : index
      %16 = vector.load %arg4[%c0_13, %c0_14] : memref<64x128xf32, #tpu.memory_space<vmem>>, vector<64x128xf32>
      %cst_15 = arith.constant dense<0.000000e+00> : vector<8x128xf32>
      %17 = tpu.matmul %15, %16, %cst_15 {dimension_numbers = #tpu.dot_dimension_numbers<[1], [0], [0], [1], [0, 0, 1, 1], [], []>} : vector<8x64xf32>, vector<64x128xf32>, vector<8x128xf32> -> vector<8x128xf32>
      %18 = arith.subf %13, %17 : vector<8x128xf32>
      %cst_16 = arith.constant 3.906250e-03 : f32
      %19 = vector.broadcast %cst_16 : f32 to vector<8x128xf32>
      %20 = arith.mulf %18, %19 : vector<8x128xf32>
      %21 = arith.truncf %20 : vector<8x128xf32> to vector<8x128xbf16>
      %c0_17 = arith.constant 0 : index
      %c0_18 = arith.constant 0 : index
      %22 = vector.load %arg6[%c0_17, %c0_18] : memref<128x512xbf16, #tpu.memory_space<vmem>>, vector<128x512xbf16>
      %cst_19 = arith.constant dense<0.000000e+00> : vector<8x512xf32>
      %23 = tpu.matmul %21, %22, %cst_19 {dimension_numbers = #tpu.dot_dimension_numbers<[1], [0], [0], [1], [0, 0, 1, 1], [], []>} : vector<8x128xbf16>, vector<128x512xbf16>, vector<8x512xf32> -> vector<8x512xf32>
      %cst_20 = arith.constant 5.000000e-01 : f32
      %24 = vector.broadcast %cst_20 : f32 to vector<8x512xf32>
      %25 = arith.mulf %24, %23 : vector<8x512xf32>
      %cst_21 = arith.constant 0.707106769 : f32
      %26 = vector.broadcast %cst_21 : f32 to vector<8x512xf32>
      %27 = arith.mulf %23, %26 : vector<8x512xf32>
      %28 = math.absf %27 : vector<8x512xf32>
      %cst_22 = arith.constant 0.327591091 : f32
      %29 = vector.broadcast %cst_22 : f32 to vector<8x512xf32>
      %30 = arith.mulf %29, %28 : vector<8x512xf32>
      %cst_23 = arith.constant 1.000000e+00 : f32
      %31 = vector.broadcast %cst_23 : f32 to vector<8x512xf32>
      %32 = arith.addf %31, %30 : vector<8x512xf32>
      %cst_24 = arith.constant 1.000000e+00 : f32
      %33 = vector.broadcast %cst_24 : f32 to vector<8x512xf32>
      %34 = arith.divf %33, %32 : vector<8x512xf32>
      %cst_25 = arith.constant 1.06140542 : f32
      %35 = vector.broadcast %cst_25 : f32 to vector<8x512xf32>
      %36 = arith.mulf %35, %34 : vector<8x512xf32>
      %cst_26 = arith.constant -1.45315206 : f32
      %37 = vector.broadcast %cst_26 : f32 to vector<8x512xf32>
      %38 = arith.addf %36, %37 : vector<8x512xf32>
      %39 = arith.mulf %38, %34 : vector<8x512xf32>
      %cst_27 = arith.constant 1.42141378 : f32
      %40 = vector.broadcast %cst_27 : f32 to vector<8x512xf32>
      %41 = arith.addf %39, %40 : vector<8x512xf32>
      %42 = arith.mulf %41, %34 : vector<8x512xf32>
      %cst_28 = arith.constant -0.284496725 : f32
      %43 = vector.broadcast %cst_28 : f32 to vector<8x512xf32>
      %44 = arith.addf %42, %43 : vector<8x512xf32>
      %45 = arith.mulf %44, %34 : vector<8x512xf32>
      %cst_29 = arith.constant 0.254829586 : f32
      %46 = vector.broadcast %cst_29 : f32 to vector<8x512xf32>
      %47 = arith.addf %45, %46 : vector<8x512xf32>
      %48 = arith.mulf %47, %34 : vector<8x512xf32>
      %cst_30 = arith.constant 0.000000e+00 : f32
      %49 = vector.broadcast %cst_30 : f32 to vector<8x512xf32>
      %50 = arith.subf %49, %28 : vector<8x512xf32>
      %51 = arith.mulf %50, %28 : vector<8x512xf32>
      %52 = math.exp %51 : vector<8x512xf32>
      %53 = arith.mulf %48, %52 : vector<8x512xf32>
      %cst_31 = arith.constant 1.000000e+00 : f32
      %54 = vector.broadcast %cst_31 : f32 to vector<8x512xf32>
      %55 = arith.subf %54, %53 : vector<8x512xf32>
      %cst_32 = arith.constant 0.000000e+00 : f32
      %56 = vector.broadcast %cst_32 : f32 to vector<8x512xf32>
      %57 = arith.cmpf oge, %27, %56 : vector<8x512xf32>
      %cst_33 = arith.constant 0.000000e+00 : f32
      %58 = vector.broadcast %cst_33 : f32 to vector<8x512xf32>
      %59 = arith.subf %58, %55 : vector<8x512xf32>
      %60 = arith.select %57, %55, %59 : vector<8x512xi1>, vector<8x512xf32>
      %cst_34 = arith.constant 1.000000e+00 : f32
      %61 = vector.broadcast %cst_34 : f32 to vector<8x512xf32>
      %62 = arith.addf %61, %60 : vector<8x512xf32>
      %63 = arith.mulf %25, %62 : vector<8x512xf32>
      %64 = arith.truncf %63 : vector<8x512xf32> to vector<8x512xbf16>
      %c0_35 = arith.constant 0 : index
      %c0_36 = arith.constant 0 : index
      %65 = vector.load %arg7[%c0_35, %c0_36] : memref<512x512xbf16, #tpu.memory_space<vmem>>, vector<512x512xbf16>
      %cst_37 = arith.constant dense<0.000000e+00> : vector<8x512xf32>
      %66 = tpu.matmul %64, %65, %cst_37 {dimension_numbers = #tpu.dot_dimension_numbers<[1], [0], [0], [1], [0, 0, 1, 1], [], []>} : vector<8x512xbf16>, vector<512x512xbf16>, vector<8x512xf32> -> vector<8x512xf32>
      %67 = arith.addf %23, %66 : vector<8x512xf32>
      %cst_38 = arith.constant dense<0.000000e+00> : vector<8xf32>
      %68 = vector.multi_reduction <add>, %67, %cst_38 [1] : vector<8x512xf32> to vector<8xf32>
      %69 = vector.shape_cast %68 : vector<8xf32> to vector<8x1xf32>
      %cst_39 = arith.constant 5.120000e+02 : f32
      %70 = vector.broadcast %cst_39 : f32 to vector<8x1xf32>
      %71 = arith.divf %69, %70 : vector<8x1xf32>
      %72 = vector.broadcast %71 : vector<8x1xf32> to vector<8x512xf32>
      %73 = arith.subf %67, %72 : vector<8x512xf32>
      %74 = arith.mulf %73, %73 : vector<8x512xf32>
      %cst_40 = arith.constant dense<0.000000e+00> : vector<8xf32>
      %75 = vector.multi_reduction <add>, %74, %cst_40 [1] : vector<8x512xf32> to vector<8xf32>
      %76 = vector.shape_cast %75 : vector<8xf32> to vector<8x1xf32>
      %cst_41 = arith.constant 5.120000e+02 : f32
      %77 = vector.broadcast %cst_41 : f32 to vector<8x1xf32>
      %78 = arith.divf %76, %77 : vector<8x1xf32>
      %79 = vector.broadcast %71 : vector<8x1xf32> to vector<8x512xf32>
      %80 = arith.subf %67, %79 : vector<8x512xf32>
      %cst_42 = arith.constant 9.99999974E-6 : f32
      %81 = vector.broadcast %cst_42 : f32 to vector<8x1xf32>
      %82 = arith.addf %78, %81 : vector<8x1xf32>
      %83 = math.rsqrt %82 : vector<8x1xf32>
      %84 = vector.broadcast %83 : vector<8x1xf32> to vector<8x512xf32>
      %85 = arith.mulf %80, %84 : vector<8x512xf32>
      %c0_43 = arith.constant 0 : index
      %c0_44 = arith.constant 0 : index
      %86 = vector.load %arg8[%c0_43, %c0_44] : memref<1x512xf32, #tpu.memory_space<vmem>>, vector<1x512xf32>
      %87 = vector.broadcast %86 : vector<1x512xf32> to vector<8x512xf32>
      %88 = arith.mulf %85, %87 : vector<8x512xf32>
      %c0_45 = arith.constant 0 : index
      %c0_46 = arith.constant 0 : index
      %89 = vector.load %arg9[%c0_45, %c0_46] : memref<1x512xf32, #tpu.memory_space<vmem>>, vector<1x512xf32>
      %90 = vector.broadcast %89 : vector<1x512xf32> to vector<8x512xf32>
      %91 = arith.addf %88, %90 : vector<8x512xf32>
      %92 = arith.mulf %91, %91 : vector<8x512xf32>
      %cst_47 = arith.constant dense<0.000000e+00> : vector<8xf32>
      %93 = vector.multi_reduction <add>, %92, %cst_47 [1] : vector<8x512xf32> to vector<8xf32>
      %94 = vector.shape_cast %93 : vector<8xf32> to vector<8x1xf32>
      %95 = math.sqrt %94 : vector<8x1xf32>
      %cst_48 = arith.constant 9.99999996E-13 : f32
      %96 = vector.broadcast %cst_48 : f32 to vector<8x1xf32>
      %97 = arith.maximumf %95, %96 : vector<8x1xf32>
      %98 = vector.broadcast %97 : vector<8x1xf32> to vector<8x512xf32>
      %99 = arith.divf %91, %98 : vector<8x512xf32>
      %c0_49 = arith.constant 0 : index
      %c0_50 = arith.constant 0 : index
      %100 = vector.load %arg10[%c0_49, %c0_50] : memref<8x512xf32, #tpu.memory_space<vmem>>, vector<8x512xf32>
      tpu.vector_store %arg10[%c0_49, %c0_50], %99 {strides = array<i32>} : memref<8x512xf32, #tpu.memory_space<vmem>>, vector<8x512xf32>,
    } else {
    }
    return
  }
  func.func @transform_0(%arg0: i32, %arg1: i32) -> (i32, i32, i32) {
    %c0_i32 = arith.constant 0 : i32
    %c0_i32_0 = arith.constant 0 : i32
    return %arg0, %arg1, %c0_i32 : i32, i32, i32
  }
  func.func @transform_1(%arg0: i32, %arg1: i32) -> (i32, i32) {
    %c0_i32 = arith.constant 0 : i32
    %c0_i32_0 = arith.constant 0 : i32
    %c0_i32_1 = arith.constant 0 : i32
    return %c0_i32, %c0_i32_0 : i32, i32
  }
  func.func @transform_2(%arg0: i32, %arg1: i32) -> (i32, i32) {
    %c0_i32 = arith.constant 0 : i32
    %c0_i32_0 = arith.constant 0 : i32
    %c0_i32_1 = arith.constant 0 : i32
    return %c0_i32, %c0_i32_0 : i32, i32
  }
  func.func @transform_3(%arg0: i32, %arg1: i32) -> (i32, i32) {
    %c0_i32 = arith.constant 0 : i32
    %c0_i32_0 = arith.constant 0 : i32
    %c0_i32_1 = arith.constant 0 : i32
    return %c0_i32, %c0_i32_0 : i32, i32
  }
  func.func @transform_4(%arg0: i32, %arg1: i32) -> (i32, i32) {
    %c0_i32 = arith.constant 0 : i32
    %c0_i32_0 = arith.constant 0 : i32
    %c0_i32_1 = arith.constant 0 : i32
    return %c0_i32, %c0_i32_0 : i32, i32
  }
  func.func @transform_5(%arg0: i32, %arg1: i32) -> (i32, i32) {
    %c0_i32 = arith.constant 0 : i32
    %c0_i32_0 = arith.constant 0 : i32
    %c0_i32_1 = arith.constant 0 : i32
    return %c0_i32, %c0_i32_0 : i32, i32
  }
  func.func @transform_6(%arg0: i32, %arg1: i32) -> (i32, i32) {
    %c0_i32 = arith.constant 0 : i32
    %c0_i32_0 = arith.constant 0 : i32
    %c0_i32_1 = arith.constant 0 : i32
    return %c0_i32, %c0_i32_0 : i32, i32
  }
  func.func @transform_7(%arg0: i32, %arg1: i32) -> (i32, i32) {
    %c0_i32 = arith.constant 0 : i32
    %c0_i32_0 = arith.constant 0 : i32
    %c0_i32_1 = arith.constant 0 : i32
    return %c0_i32, %c0_i32_0 : i32, i32
  }
  func.func @transform_8(%arg0: i32, %arg1: i32) -> (i32, i32) {
    %c0_i32 = arith.constant 0 : i32
    %c0_i32_0 = arith.constant 0 : i32
    return %arg0, %c0_i32 : i32, i32
  }
}

</mosaic_0001>

<llo_original>
// kernel: tpu_custom_call.1
$region0: #{tpu_custom_call.1}
  #allocation0 [shape = 'u32[]', space=smem, size = 0x4, offset = 0x4, fixed_abs, tag = 'smem constant byte address 0x4 - core index']
  #allocation1 [shape = 'u32[72,128]{1,0:T(1,128)}', space=vmem, size = 0x9000, scoped, tag = 'internal scratch']
  #allocation2 [shape = 'f32[8,128]{1,0:T(8,128)}', space=vmem, size = 0x1000, scoped, tag = 'scratch operand']
  %s0 = inlined_call_operand.hbm [shape: f32[8,16,64], index: 0, kind: input, shape index: {}]
  %s1 = inlined_call_operand.hbm [shape: f32[64,128], index: 1, kind: input, shape index: {}]
  %s2 = inlined_call_operand.hbm [shape: f32[64,128], index: 2, kind: input, shape index: {}]
  %s3 = inlined_call_operand.hbm [shape: f32[64,128], index: 3, kind: input, shape index: {}]
  %s4 = inlined_call_operand.hbm [shape: bf16[128,512], index: 4, kind: input, shape index: {}]
  %s5 = inlined_call_operand.hbm [shape: bf16[512,512], index: 5, kind: input, shape index: {}]
  %s6 = inlined_call_operand.vmem [shape: f32[1,512], index: 6, kind: input, shape index: {}]
  %s7 = inlined_call_operand.hbm [shape: f32[1,512], index: 7, kind: input, shape index: {}]
  %s8 = inlined_call_operand.hbm [shape: f32[8,512], index: 8, kind: output, shape index: {}]
  %s9 = sld [smem:[#allocation0]]
  $region101: #{tpu_custom_call.1} parent=0
    _
  %s11 = ssub.s32 1, %s9
  %s12 = scalar_select 0, %s11, %s9
  $region1: #{tpu_custom_call.1} parent=0
    #allocation3 [shape = 'u8[65536]{0}', space=vmem, size = 0x10000, scoped, tag = 'input window, operand 0']
    #allocation4 [shape = 's32[2]{0}', space=sflag, size = 0x8, scoped, tag = 'scoped memory for tpu_custom_call.1']
    #allocation5 [shape = 's32[2]{0}', space=sflag, size = 0x8, scoped, tag = 'scoped memory for tpu_custom_call.1']
    #allocation6 [shape = 'u8[32768]{0}', space=vmem, size = 0x8000, scoped, tag = 'input window, operand 1, single buffered']
    #allocation7 [shape = 's32[1]{0}', space=sflag, size = 0x4, scoped, tag = 'scoped memory for tpu_custom_call.1']
    #allocation8 [shape = 'u8[32768]{0}', space=vmem, size = 0x8000, scoped, tag = 'input window, operand 2, single buffered']
    #allocation9 [shape = 'u8[32768]{0}', space=vmem, size = 0x8000, scoped, tag = 'input window, operand 3, single buffered']
    #allocation10 [shape = 's32[1]{0}', space=sflag, size = 0x4, scoped, tag = 'scoped memory for tpu_custom_call.1']
    #allocation11 [shape = 'u8[131072]{0}', space=vmem, size = 0x20000, scoped, tag = 'input window, operand 4, single buffered']
    #allocation12 [shape = 'u8[524288]{0}', space=vmem, size = 0x80000, scoped, tag = 'input window, operand 5, single buffered']
    #allocation13 [shape = 's32[1]{0}', space=sflag, size = 0x4, scoped, tag = 'scoped memory for tpu_custom_call.1']
    #allocation14 [shape = 'u8[2048]{0}', space=vmem, size = 0x800, scoped, tag = 'input window, operand 7, single buffered']
    #allocation15 [shape = 'u8[16384]{0}', space=vmem, size = 0x4000, scoped, tag = 'output window, operand 0, single buffered']
    %13 = vsyncpa [#allocation4], 0
    %s14 = scalar_lea.sflag [#allocation4], 1
    %15 = vsyncpa %s14, 0
    %16 = vsyncpa [#allocation7], 0
    %17 = vsyncpa [#allocation10], 0
    %18 = vsyncpa [#allocation13], 0
    %19 = vsyncpa [#allocation5], 0
    loop: start=0, step=1, limit=4
    $region2: #{tpu_custom_call.1} parent=1 // loop_pre_header
      _
    $region3: #{tpu_custom_call.1} parent=1 // loop_header
      %s21 = sphi 0, %s25
      %p22 = scmp.ge.s32.totalorder %s21, 4
      %s28 = sphi 0, %s40
      %s29 = sphi 0, %s36
      %s30 = sphi 0, %s28
      %s31 = sphi 0, %s29
      %s32 = sphi 0, %s30
      %s33 = sphi 0, %s31
      %s45 = sphi 0, %s47
      %s48 = sphi 0, %s45
      %s49 = sphi 0, %s48
      %s65 = sphi 0, %s49
      %s69 = sphi 0, %s69
      %s71 = sphi 0, %s69
      %s72 = sphi 0, %s71
      %s86 = sphi 0, %s72
      %s90 = sphi 0, %s90
      %s92 = sphi 0, %s90
      %s93 = sphi 0, %s92
      %s107 = sphi 0, %s93
      %s111 = sphi 0, %s111
      %s113 = sphi 0, %s111
      %s114 = sphi 0, %s113
      %s128 = sphi 0, %s114
      %s132 = sphi 0, %s132
      %s134 = sphi 0, %s132
      %s135 = sphi 0, %s134
      %s149 = sphi 0, %s135
      %s153 = sphi 0, %s153
      %s155 = sphi 0, %s153
      %s156 = sphi 0, %s155
      %s170 = sphi 0, %s156
      %s174 = sphi 0, %s174
      %s176 = sphi 0, %s174
      %s177 = sphi 0, %s176
      %s191 = sphi 0, %s177
      %s195 = sphi 0, %s195
      %s197 = sphi 0, %s195
      %s198 = sphi 0, %s197
      %s212 = sphi 0, %s198
      %s218 = sphi 0, %s220
      %s221 = sphi 0, %s218
      %s222 = sphi 0, %s221
      %s238 = sphi 0, %s222
    $region4: #{tpu_custom_call.1} parent=1 // loop_header_branch
      %24 = sbr.rel (%p22) target = $region8
    $region5: #{tpu_custom_call.1} parent=1 // loop_body
      %s26 = ssub.s32 %s21, 1
      %s27 = ssub.s32 %s21, 2
      %s34 = sadd.s32 1, %s29
      %p35 = scmp.ge.s32.totalorder %s34, 2
      %s36 = scalar_select %p35, 0, %s34
      %s37 = sadd.s32 1, %s28
      %s38 = scalar_select %p35, %s37, %s28
      %p39 = scmp.ge.s32.totalorder %s38, 1
      %s40 = scalar_select %p39, 0, %s38
      %s41 = ssub.s32 %s28, %s40
      %s42 = ssub.s32 %s29, %s36
      %s43 = sor.u32 %s41, %s42
      %p44 = scmp.eq.s32.totalorder %s43, 0
      %s46 = sadd.s32 %s45, 1
      %s47 = scalar_select %p44, %s45, %s46
      %p50 = pneg %p44
      %p51 = scmp.eq.s32.totalorder %s21, 1
      %p52 = por %p50, %p51
      %p53 = scmp.ne.s32.totalorder %s45, %s48
      %p54 = scmp.eq.s32.totalorder %s21, 0
      %p55 = por %p53, %p54
      %p56 = scmp.ne.s32.totalorder %s45, %s48
      %p57 = scmp.eq.s32.totalorder %s26, 1
      %p58 = por %p56, %p57
      %p59 = scmp.ne.s32.totalorder %s48, %s49
      %p60 = scmp.eq.s32.totalorder %s26, 0
      %p61 = por %p59, %p60
      %p62 = scmp.ne.s32.totalorder %s48, %s49
      %p63 = scmp.eq.s32.totalorder %s27, 1
      %p64 = por %p62, %p63
      %p66 = scmp.ne.s32.totalorder %s49, %s65
      %p67 = scmp.eq.s32.totalorder %s27, 0
      %p68 = por %p66, %p67
      %s70 = sadd.s32 %s69, 1
      %p73 = scmp.eq.s32.totalorder %s21, 1
      %p74 = scmp.ne.s32.totalorder %s69, %s71
      %p75 = scmp.eq.s32.totalorder %s21, 0
      %p76 = por %p74, %p75
      %p77 = scmp.ne.s32.totalorder %s69, %s71
      %p78 = scmp.eq.s32.totalorder %s26, 1
      %p79 = por %p77, %p78
      %p80 = scmp.ne.s32.totalorder %s71, %s72
      %p81 = scmp.eq.s32.totalorder %s26, 0
      %p82 = por %p80, %p81
      %p83 = scmp.ne.s32.totalorder %s71, %s72
      %p84 = scmp.eq.s32.totalorder %s27, 1
      %p85 = por %p83, %p84
      %p87 = scmp.ne.s32.totalorder %s72, %s86
      %p88 = scmp.eq.s32.totalorder %s27, 0
      %p89 = por %p87, %p88
      %s91 = sadd.s32 %s90, 1
      %p94 = scmp.eq.s32.totalorder %s21, 1
      %p95 = scmp.ne.s32.totalorder %s90, %s92
      %p96 = scmp.eq.s32.totalorder %s21, 0
      %p97 = por %p95, %p96
      %p98 = scmp.ne.s32.totalorder %s90, %s92
      %p99 = scmp.eq.s32.totalorder %s26, 1
      %p100 = por %p98, %p99
      %p101 = scmp.ne.s32.totalorder %s92, %s93
      %p102 = scmp.eq.s32.totalorder %s26, 0
      %p103 = por %p101, %p102
      %p104 = scmp.ne.s32.totalorder %s92, %s93
      %p105 = scmp.eq.s32.totalorder %s27, 1
      %p106 = por %p104, %p105
      %p108 = scmp.ne.s32.totalorder %s93, %s107
      %p109 = scmp.eq.s32.totalorder %s27, 0
      %p110 = por %p108, %p109
      %s112 = sadd.s32 %s111, 1
      %p115 = scmp.eq.s32.totalorder %s21, 1
      %p116 = scmp.ne.s32.totalorder %s111, %s113
      %p117 = scmp.eq.s32.totalorder %s21, 0
      %p118 = por %p116, %p117
      %p119 = scmp.ne.s32.totalorder %s111, %s113
      %p120 = scmp.eq.s32.totalorder %s26, 1
      %p121 = por %p119, %p120
      %p122 = scmp.ne.s32.totalorder %s113, %s114
      %p123 = scmp.eq.s32.totalorder %s26, 0
      %p124 = por %p122, %p123
      %p125 = scmp.ne.s32.totalorder %s113, %s114
      %p126 = scmp.eq.s32.totalorder %s27, 1
      %p127 = por %p125, %p126
      %p129 = scmp.ne.s32.totalorder %s114, %s128
      %p130 = scmp.eq.s32.totalorder %s27, 0
      %p131 = por %p129, %p130
      %s133 = sadd.s32 %s132, 1
      %p136 = scmp.eq.s32.totalorder %s21, 1
      %p137 = scmp.ne.s32.totalorder %s132, %s134
      %p138 = scmp.eq.s32.totalorder %s21, 0
      %p139 = por %p137, %p138
      %p140 = scmp.ne.s32.totalorder %s132, %s134
      %p141 = scmp.eq.s32.totalorder %s26, 1
      %p142 = por %p140, %p141
      %p143 = scmp.ne.s32.totalorder %s134, %s135
      %p144 = scmp.eq.s32.totalorder %s26, 0
      %p145 = por %p143, %p144
      %p146 = scmp.ne.s32.totalorder %s134, %s135
      %p147 = scmp.eq.s32.totalorder %s27, 1
      %p148 = por %p146, %p147
      %p150 = scmp.ne.s32.totalorder %s135, %s149
      %p151 = scmp.eq.s32.totalorder %s27, 0
      %p152 = por %p150, %p151
      %s154 = sadd.s32 %s153, 1
      %p157 = scmp.eq.s32.totalorder %s21, 1
      %p158 = scmp.ne.s32.totalorder %s153, %s155
      %p159 = scmp.eq.s32.totalorder %s21, 0
      %p160 = por %p158, %p159
      %p161 = scmp.ne.s32.totalorder %s153, %s155
      %p162 = scmp.eq.s32.totalorder %s26, 1
      %p163 = por %p161, %p162
      %p164 = scmp.ne.s32.totalorder %s155, %s156
      %p165 = scmp.eq.s32.totalorder %s26, 0
      %p166 = por %p164, %p165
      %p167 = scmp.ne.s32.totalorder %s155, %s156
      %p168 = scmp.eq.s32.totalorder %s27, 1
      %p169 = por %p167, %p168
      %p171 = scmp.ne.s32.totalorder %s156, %s170
      %p172 = scmp.eq.s32.totalorder %s27, 0
      %p173 = por %p171, %p172
      %s175 = sadd.s32 %s174, 1
      %p178 = scmp.eq.s32.totalorder %s21, 1
      %p179 = scmp.ne.s32.totalorder %s174, %s176
      %p180 = scmp.eq.s32.totalorder %s21, 0
      %p181 = por %p179, %p180
      %p182 = scmp.ne.s32.totalorder %s174, %s176
      %p183 = scmp.eq.s32.totalorder %s26, 1
      %p184 = por %p182, %p183
      %p185 = scmp.ne.s32.totalorder %s176, %s177
      %p186 = scmp.eq.s32.totalorder %s26, 0
      %p187 = por %p185, %p186
      %p188 = scmp.ne.s32.totalorder %s176, %s177
      %p189 = scmp.eq.s32.totalorder %s27, 1
      %p190 = por %p188, %p189
      %p192 = scmp.ne.s32.totalorder %s177, %s191
      %p193 = scmp.eq.s32.totalorder %s27, 0
      %p194 = por %p192, %p193
      %s196 = sadd.s32 %s195, 1
      %p199 = scmp.eq.s32.totalorder %s21, 1
      %p200 = scmp.ne.s32.totalorder %s195, %s197
      %p201 = scmp.eq.s32.totalorder %s21, 0
      %p202 = por %p200, %p201
      %p203 = scmp.ne.s32.totalorder %s195, %s197
      %p204 = scmp.eq.s32.totalorder %s26, 1
      %p205 = por %p203, %p204
      %p206 = scmp.ne.s32.totalorder %s197, %s198
      %p207 = scmp.eq.s32.totalorder %s26, 0
      %p208 = por %p206, %p207
      %p209 = scmp.ne.s32.totalorder %s197, %s198
      %p210 = scmp.eq.s32.totalorder %s27, 1
      %p211 = por %p209, %p210
      %p213 = scmp.ne.s32.totalorder %s198, %s212
      %p214 = scmp.eq.s32.totalorder %s27, 0
      %p215 = por %p213, %p214
      %s216 = ssub.s32 %s28, %s40
      %p217 = scmp.eq.s32.totalorder %s216, 0
      %s219 = sadd.s32 %s218, 1
      %s220 = scalar_select %p217, %s218, %s219
      %p223 = pneg %p217
      %p224 = scmp.eq.s32.totalorder %s21, 1
      %p225 = por %p223, %p224
      %p226 = scmp.ne.s32.totalorder %s218, %s221
      %p227 = scmp.eq.s32.totalorder %s21, 0
      %p228 = por %p226, %p227
      %p229 = scmp.ne.s32.totalorder %s218, %s221
      %p230 = scmp.eq.s32.totalorder %s26, 1
      %p231 = por %p229, %p230
      %p232 = scmp.ne.s32.totalorder %s221, %s222
      %p233 = scmp.eq.s32.totalorder %s26, 0
      %p234 = por %p232, %p233
      %p235 = scmp.ne.s32.totalorder %s221, %s222
      %p236 = scmp.eq.s32.totalorder %s27, 1
      %p237 = por %p235, %p236
      %p239 = scmp.ne.s32.totalorder %s222, %s238
      %p240 = scmp.eq.s32.totalorder %s27, 0
      %p241 = por %p239, %p240
      %p242 = scmp.le.s32.totalorder 1, %s21
      %p243 = scmp.lt.s32.totalorder %s21, 3
      %p244 = pnand %p242, %p243
      %p245 = pneg %p244
      // Predicated region
      $region9: #{tpu_custom_call.1} parent=5 // pred_check
        _
      $region10: #{tpu_custom_call.1} parent=5 // pred_check_branch
        %247 = sbr.rel (%p244) target = $region12
      $region11: #{tpu_custom_call.1} parent=5 // pred_region
        %s248 = ssub.s32 %s21, 1
        // Predicated region
        $region13: #{tpu_custom_call.1} parent=11 // pred_check
          %p249 = pneg %p82
        $region14: #{tpu_custom_call.1} parent=11 // pred_check_branch
          %251 = sbr.rel (%p249) target = $region16
        $region15: #{tpu_custom_call.1} parent=11 // pred_region
          %253 = vsyncadd [#allocation7], 0
          %s254 = sshll.u32 %s1, 4
          %s255 = int_to_ptr.hbm [resolvable:$true] %s254
          %s256 = sshll.u32 [#allocation6], 4
          %s257 = int_to_ptr.vmem [resolvable:$true] %s256
          %262 = dma.hbm_to_vmem [thread:$0]  %s255, 1024, %s257, [#allocation7], 128, 128, 8
        $region16: #{tpu_custom_call.1} parent=11 // pred_fallthru
          _
        // Predicated region
        $region17: #{tpu_custom_call.1} parent=11 // pred_check
          %p263 = pneg %p103
        $region18: #{tpu_custom_call.1} parent=11 // pred_check_branch
          %265 = sbr.rel (%p263) target = $region20
        $region19: #{tpu_custom_call.1} parent=11 // pred_region
          %267 = vsyncadd [#allocation7], 0
          %s268 = sshll.u32 %s2, 4
          %s269 = int_to_ptr.hbm [resolvable:$true] %s268
          %s270 = sshll.u32 [#allocation8], 4
          %s271 = int_to_ptr.vmem [resolvable:$true] %s270
          %276 = dma.hbm_to_vmem [thread:$0]  %s269, 1024, %s271, [#allocation7], 128, 128, 8
        $region20: #{tpu_custom_call.1} parent=11 // pred_fallthru
          _
        // Predicated region
        $region21: #{tpu_custom_call.1} parent=11 // pred_check
          %p277 = pneg %p124
        $region22: #{tpu_custom_call.1} parent=11 // pred_check_branch
          %279 = sbr.rel (%p277) target = $region24
        $region23: #{tpu_custom_call.1} parent=11 // pred_region
          %281 = vsyncadd [#allocation10], 0
          %s282 = sshll.u32 %s3, 4
          %s283 = int_to_ptr.hbm [resolvable:$true] %s282
          %s284 = sshll.u32 [#allocation9], 4
          %s285 = int_to_ptr.vmem [resolvable:$true] %s284
          %290 = dma.hbm_to_vmem [thread:$0]  %s283, 1024, %s285, [#allocation10], 128, 128, 8
        $region24: #{tpu_custom_call.1} parent=11 // pred_fallthru
          _
        // Predicated region
        $region25: #{tpu_custom_call.1} parent=11 // pred_check
          %p291 = pneg %p145
        $region26: #{tpu_custom_call.1} parent=11 // pred_check_branch
          %293 = sbr.rel (%p291) target = $region28
        $region27: #{tpu_custom_call.1} parent=11 // pred_region
          %295 = vsyncadd [#allocation10], 0
          %s296 = sshll.u32 %s4, 4
          %s297 = int_to_ptr.hbm [resolvable:$true] %s296
          %s298 = sshll.u32 [#allocation11], 4
          %s299 = int_to_ptr.vmem [resolvable:$true] %s298
          %304 = dma.hbm_to_vmem [thread:$0]  %s297, 4096, %s299, [#allocation10], 256, 256, 16
        $region28: #{tpu_custom_call.1} parent=11 // pred_fallthru
          _
        // Predicated region
        $region29: #{tpu_custom_call.1} parent=11 // pred_check
          %p305 = pneg %p166
        $region30: #{tpu_custom_call.1} parent=11 // pred_check_branch
          %307 = sbr.rel (%p305) target = $region32
        $region31: #{tpu_custom_call.1} parent=11 // pred_region
          %309 = vsyncadd [#allocation13], 0
          %s310 = sshll.u32 %s5, 4
          %s311 = int_to_ptr.hbm [resolvable:$true] %s310
          %s312 = sshll.u32 [#allocation12], 4
          %s313 = int_to_ptr.vmem [resolvable:$true] %s312
          %318 = dma.hbm_to_vmem [thread:$0]  %s311, 16384, %s313, [#allocation13], 256, 256, 16
        $region32: #{tpu_custom_call.1} parent=11 // pred_fallthru
          _
        // Predicated region
        $region33: #{tpu_custom_call.1} parent=11 // pred_check
          %p319 = pneg %p187
        $region34: #{tpu_custom_call.1} parent=11 // pred_check_branch
          %321 = sbr.rel (%p319) target = $region36
        $region35: #{tpu_custom_call.1} parent=11 // pred_region
          _
        $region36: #{tpu_custom_call.1} parent=11 // pred_fallthru
          _
        // Predicated region
        $region37: #{tpu_custom_call.1} parent=11 // pred_check
          %p322 = pneg %p208
        $region38: #{tpu_custom_call.1} parent=11 // pred_check_branch
          %324 = sbr.rel (%p322) target = $region40
        $region39: #{tpu_custom_call.1} parent=11 // pred_region
          %326 = vsyncadd [#allocation13], 0
          %s328 = sshll.u32 %s7, 4
          %s329 = int_to_ptr.hbm [resolvable:$true] %s328
          %s330 = sshll.u32 [#allocation14], 4
          %s331 = int_to_ptr.vmem [resolvable:$true] %s330
          %333 = dma.hbm_to_vmem [thread:$0]  %s329, 64, %s331, [#allocation13]
        $region40: #{tpu_custom_call.1} parent=11 // pred_fallthru
          _
      $region12: #{tpu_custom_call.1} parent=5 // pred_fallthru
        _
      %p334 = scmp.lt.s32.totalorder %s21, 2
      // Predicated region
      $region41: #{tpu_custom_call.1} parent=5 // pred_check
        %p335 = pneg %p334
      $region42: #{tpu_custom_call.1} parent=5 // pred_check_branch
        %337 = sbr.rel (%p335) target = $region44
      $region43: #{tpu_custom_call.1} parent=5 // pred_region
        // Predicated region
        $region45: #{tpu_custom_call.1} parent=43 // pred_check
          %p338 = pneg %p55
        $region46: #{tpu_custom_call.1} parent=43 // pred_check_branch
          %340 = sbr.rel (%p338) target = $region48
        $region47: #{tpu_custom_call.1} parent=43 // pred_region
          %s341 = sand.u32 %s45, 1
          %s342 = scalar_lea.sflag [#allocation4], %s341
          %s343 = sand.u32 %s45, 1
          %s344 = smul.addr %s343, 64
          %s345 = scalar_lea.vmem [#allocation3], %s344
          %s346 = smul.u32 8, %s28
          %348 = vsyncadd %s342, 0
          %s349 = smul.addr %s346, 2
          %s350 = sadd.s32 %s29, %s349
          %s351 = smul.addr %s350, 8
          %s352 = scalar_lea.hbm %s0, %s351
          %s353 = sshll.u32 %s352, 4
          %s354 = int_to_ptr.hbm [resolvable:$true] %s353
          %s355 = sshll.u32 %s345, 4
          %s356 = int_to_ptr.vmem [resolvable:$true] %s355
          %361 = dma.hbm_to_vmem [thread:$0]  %s354, 1024, %s356, %s342, 256, 128, 8
        $region48: #{tpu_custom_call.1} parent=43 // pred_fallthru
          _
      $region44: #{tpu_custom_call.1} parent=5 // pred_fallthru
        _
      %p362 = scmp.le.s32.totalorder 1, %s21
      %p363 = scmp.lt.s32.totalorder %s21, 3
      %p364 = pnand %p362, %p363
      %p365 = pneg %p364
      // Predicated region
      $region49: #{tpu_custom_call.1} parent=5 // pred_check
        _
      $region50: #{tpu_custom_call.1} parent=5 // pred_check_branch
        %367 = sbr.rel (%p364) target = $region52
      $region51: #{tpu_custom_call.1} parent=5 // pred_region
        %s368 = ssub.s32 %s21, 1
        %s369 = sand.u32 %s48, 1
        %s370 = scalar_lea.sflag [#allocation4], %s369
        %s371 = sand.u32 %s48, 1
        %s372 = smul.addr %s371, 64
        %s373 = scalar_lea.vmem [#allocation3], %s372
        // Predicated region
        $region53: #{tpu_custom_call.1} parent=51 // pred_check
          %p374 = pneg %p61
        $region54: #{tpu_custom_call.1} parent=51 // pred_check_branch
          %376 = sbr.rel (%p374) target = $region56
        $region55: #{tpu_custom_call.1} parent=51 // pred_region
          %378 = dma.done %s370, 1024
        $region56: #{tpu_custom_call.1} parent=51 // pred_fallthru
          _
        // Predicated region
        $region57: #{tpu_custom_call.1} parent=51 // pred_check
          %p379 = pneg %p82
        $region58: #{tpu_custom_call.1} parent=51 // pred_check_branch
          %381 = sbr.rel (%p379) target = $region60
        $region59: #{tpu_custom_call.1} parent=51 // pred_region
          %383 = dma.done [#allocation7], 1024
        $region60: #{tpu_custom_call.1} parent=51 // pred_fallthru
          _
        // Predicated region
        $region61: #{tpu_custom_call.1} parent=51 // pred_check
          %p384 = pneg %p103
        $region62: #{tpu_custom_call.1} parent=51 // pred_check_branch
          %386 = sbr.rel (%p384) target = $region64
        $region63: #{tpu_custom_call.1} parent=51 // pred_region
          %388 = dma.done [#allocation7], 1024
        $region64: #{tpu_custom_call.1} parent=51 // pred_fallthru
          _
        // Predicated region
        $region65: #{tpu_custom_call.1} parent=51 // pred_check
          %p389 = pneg %p124
        $region66: #{tpu_custom_call.1} parent=51 // pred_check_branch
          %391 = sbr.rel (%p389) target = $region68
        $region67: #{tpu_custom_call.1} parent=51 // pred_region
          %393 = dma.done [#allocation10], 1024
        $region68: #{tpu_custom_call.1} parent=51 // pred_fallthru
          _
        // Predicated region
        $region69: #{tpu_custom_call.1} parent=51 // pred_check
          %p394 = pneg %p145
        $region70: #{tpu_custom_call.1} parent=51 // pred_check_branch
          %396 = sbr.rel (%p394) target = $region72
        $region71: #{tpu_custom_call.1} parent=51 // pred_region
          %398 = dma.done [#allocation10], 4096
        $region72: #{tpu_custom_call.1} parent=51 // pred_fallthru
          _
        // Predicated region
        $region73: #{tpu_custom_call.1} parent=51 // pred_check
          %p399 = pneg %p166
        $region74: #{tpu_custom_call.1} parent=51 // pred_check_branch
          %401 = sbr.rel (%p399) target = $region76
        $region75: #{tpu_custom_call.1} parent=51 // pred_region
          %403 = dma.done [#allocation13], 16384
        $region76: #{tpu_custom_call.1} parent=51 // pred_fallthru
          _
        // Predicated region
        $region77: #{tpu_custom_call.1} parent=51 // pred_check
          %p404 = pneg %p208
        $region78: #{tpu_custom_call.1} parent=51 // pred_check_branch
          %406 = sbr.rel (%p404) target = $region80
        $region79: #{tpu_custom_call.1} parent=51 // pred_region
          %408 = dma.done [#allocation13], 64
        $region80: #{tpu_custom_call.1} parent=51 // pred_fallthru
          _
        %s409 = sand.u32 %s48, 1
        %s410 = scalar_lea.sflag [#allocation4], %s409
        %s411 = sand.u32 %s48, 1
        %s412 = smul.addr %s411, 64
        %s413 = scalar_lea.vmem [#allocation3], %s412
        %p414 = pneg %p61
        %p415 = pneg %p58
        %p416 = pneg %p82
        %p417 = pneg %p79
        %p418 = pneg %p103
        %p419 = pneg %p100
        %p420 = pneg %p124
        %p421 = pneg %p121
        %p422 = pneg %p145
        %p423 = pneg %p142
        %p424 = pneg %p166
        %p425 = pneg %p163
        %p426 = pneg %p187
        %p427 = pneg %p184
        %p428 = pneg %p208
        %p429 = pneg %p205
        %p430 = pneg %p234
        %p431 = pneg %p231
        %s432 = smul.u32 8, %s30
        %v433 = vld [vmem:[%s373] sm:$0xff]
        %v434 = vld [vmem:[%s373 + $0x8] sm:$0xff]
        %v435 = vld [vmem:[%s373 + $0x10] sm:$0xff]
        %v436 = vld [vmem:[%s373 + $0x18] sm:$0xff]
        %v437 = vld [vmem:[%s373 + $0x20] sm:$0xff]
        %v438 = vld [vmem:[%s373 + $0x28] sm:$0xff]
        %v439 = vld [vmem:[%s373 + $0x30] sm:$0xff]
        %v440 = vld [vmem:[%s373 + $0x38] sm:$0xff]
        %vm441 = vcmask 523264
        %v442 = vsel %vm441, %v433, 0.0
        %v443 = vrot.slane %v442, 4
        %v444 = vadd.f32 %v442, %v443
        %v445 = vrot.slane %v444, 2
        %v446 = vadd.f32 %v444, %v445
        %v447 = vrot.slane %v446, 1
        %v448 = vadd.f32 %v446, %v447
        %v449 = vsel %vm441, %v434, 0.0
        %v450 = vrot.slane %v449, 4
        %v451 = vadd.f32 %v449, %v450
        %v452 = vrot.slane %v451, 2
        %v453 = vadd.f32 %v451, %v452
        %v454 = vrot.slane %v453, 1
        %v455 = vadd.f32 %v453, %v454
        %v456 = vsel %vm441, %v435, 0.0
        %v457 = vrot.slane %v456, 4
        %v458 = vadd.f32 %v456, %v457
        %v459 = vrot.slane %v458, 2
        %v460 = vadd.f32 %v458, %v459
        %v461 = vrot.slane %v460, 1
        %v462 = vadd.f32 %v460, %v461
        %v463 = vsel %vm441, %v436, 0.0
        %v464 = vrot.slane %v463, 4
        %v465 = vadd.f32 %v463, %v464
        %v466 = vrot.slane %v465, 2
        %v467 = vadd.f32 %v465, %v466
        %v468 = vrot.slane %v467, 1
        %v469 = vadd.f32 %v467, %v468
        %v470 = vsel %vm441, %v437, 0.0
        %v471 = vrot.slane %v470, 4
        %v472 = vadd.f32 %v470, %v471
        %v473 = vrot.slane %v472, 2
        %v474 = vadd.f32 %v472, %v473
        %v475 = vrot.slane %v474, 1
        %v476 = vadd.f32 %v474, %v475
        %v477 = vsel %vm441, %v438, 0.0
        %v478 = vrot.slane %v477, 4
        %v479 = vadd.f32 %v477, %v478
        %v480 = vrot.slane %v479, 2
        %v481 = vadd.f32 %v479, %v480
        %v482 = vrot.slane %v481, 1
        %v483 = vadd.f32 %v481, %v482
        %v484 = vsel %vm441, %v439, 0.0
        %v485 = vrot.slane %v484, 4
        %v486 = vadd.f32 %v484, %v485
        %v487 = vrot.slane %v486, 2
        %v488 = vadd.f32 %v486, %v487
        %v489 = vrot.slane %v488, 1
        %v490 = vadd.f32 %v488, %v489
        %v491 = vsel %vm441, %v440, 0.0
        %v492 = vrot.slane %v491, 4
        %v493 = vadd.f32 %v491, %v492
        %v494 = vrot.slane %v493, 2
        %v495 = vadd.f32 %v493, %v494
        %v496 = vrot.slane %v495, 1
        %v497 = vadd.f32 %v495, %v496
        %p498 = scmp.eq.s32.totalorder %s31, 0
        // Predicated region
        $region81: #{tpu_custom_call.1} parent=51 // pred_check
          %p499 = pneg %p498
        $region82: #{tpu_custom_call.1} parent=51 // pred_check_branch
          %501 = sbr.rel (%p499) target = $region84
        $region83: #{tpu_custom_call.1} parent=51 // pred_region
          %v502 = vld [vmem:[#allocation9] sm:$0xff]
          %v503 = vld [vmem:[#allocation9 + $0x8] sm:$0xff]
          %v504 = vld [vmem:[#allocation9 + $0x10] sm:$0xff]
          %v505 = vld [vmem:[#allocation9 + $0x18] sm:$0xff]
          %v506 = vld [vmem:[#allocation9 + $0x20] sm:$0xff]
          %v507 = vld [vmem:[#allocation9 + $0x28] sm:$0xff]
          %v508 = vld [vmem:[#allocation9 + $0x30] sm:$0xff]
          %v509 = vld [vmem:[#allocation9 + $0x38] sm:$0xff]
          %v518 = vrot.slane %v434, 7
          %vm519 = vcmask 1041409
          %v520 = vsel %vm519, %v518, %v433
          %v521 = vrot.slane %v435, 6
          %vm522 = vcmask 1042434
          %v523 = vsel %vm522, %v521, %v520
          %v524 = vrot.slane %v436, 5
          %vm525 = vcmask 1043459
          %v526 = vsel %vm525, %v524, %v523
          %v527 = vrot.slane %v437, 4
          %vm528 = vcmask 1044484
          %v529 = vsel %vm528, %v527, %v526
          %v530 = vrot.slane %v438, 3
          %vm531 = vcmask 1045509
          %v532 = vsel %vm531, %v530, %v529
          %v533 = vrot.slane %v439, 2
          %vm534 = vcmask 1046534
          %v535 = vsel %vm534, %v533, %v532
          %v536 = vrot.slane %v440, 1
          %vm537 = vcmask 1047559
          %v538 = vsel %vm537, %v536, %v535
          %v539 = vsel %vm441, %v538, 0
          %541 = vmatpush.msra.mxu0 0.0
          %542 = vmatpush.msra.mxu0 0.0
          %543 = vmatpush.msra.mxu0 0.0
          %544 = vmatpush.msra.mxu0 0.0
          %545 = vmatpush.msra.mxu0 0.0
          %546 = vmatpush.msra.mxu0 0.0
          %547 = vmatpush.msra.mxu0 0.0
          %548 = vmatpush.msra.mxu0 0.0
          %549 = vmatpush.msra.mxu0 %v509
          %550 = vmatpush.msra.mxu0 %v508
          %551 = vmatpush.msra.mxu0 %v507
          %552 = vmatpush.msra.mxu0 %v506
          %553 = vmatpush.msra.mxu0 %v505
          %554 = vmatpush.msra.mxu0 %v504
          %555 = vmatpush.msra.mxu0 %v503
          %556 = vmatpush.msra.mxu0 %v502
          %557 = vmatmul.f32.gmra.mxu0 %v539
          %v558 = vpop.f32.mrf.mxu0
          %v559 = vadd.f32 0.0, %v558
          %560 = vdwg.mxu0
          %v561 = vsub.f32 0.0, %v559
          %562 = vst [vmem:[#allocation2] sm:$0xff] %v561
        $region84: #{tpu_custom_call.1} parent=51 // pred_fallthru
          _
        %v563 = vld [vmem:[#allocation2] sm:$0xff]
        %v564 = vld [vmem:[#allocation6] sm:$0xff]
        %v565 = vld [vmem:[#allocation6 + $0x8] sm:$0xff]
        %v566 = vld [vmem:[#allocation6 + $0x10] sm:$0xff]
        %v567 = vld [vmem:[#allocation6 + $0x18] sm:$0xff]
        %v568 = vld [vmem:[#allocation6 + $0x20] sm:$0xff]
        %v569 = vld [vmem:[#allocation6 + $0x28] sm:$0xff]
        %v570 = vld [vmem:[#allocation6 + $0x30] sm:$0xff]
        %v571 = vld [vmem:[#allocation6 + $0x38] sm:$0xff]
        %vm580 = vcmask 1041409
        %v581 = vsel %vm580, %v455, %v448
        %vm582 = vcmask 1042434
        %v583 = vsel %vm582, %v462, %v581
        %vm584 = vcmask 1043459
        %v585 = vsel %vm584, %v469, %v583
        %vm586 = vcmask 1044484
        %v587 = vsel %vm586, %v476, %v585
        %vm588 = vcmask 1045509
        %v589 = vsel %vm588, %v483, %v587
        %vm590 = vcmask 1046534
        %v591 = vsel %vm590, %v490, %v589
        %vm592 = vcmask 1047559
        %v593 = vsel %vm592, %v497, %v591
        %v594 = vsel %vm441, %v593, 0
        %596 = vmatpush.msra.mxu0 0.0
        %597 = vmatpush.msra.mxu0 0.0
        %598 = vmatpush.msra.mxu0 0.0
        %599 = vmatpush.msra.mxu0 0.0
        %600 = vmatpush.msra.mxu0 0.0
        %601 = vmatpush.msra.mxu0 0.0
        %602 = vmatpush.msra.mxu0 0.0
        %603 = vmatpush.msra.mxu0 0.0
        %604 = vmatpush.msra.mxu0 %v571
        %605 = vmatpush.msra.mxu0 %v570
        %606 = vmatpush.msra.mxu0 %v569
        %607 = vmatpush.msra.mxu0 %v568
        %608 = vmatpush.msra.mxu0 %v567
        %609 = vmatpush.msra.mxu0 %v566
        %610 = vmatpush.msra.mxu0 %v565
        %611 = vmatpush.msra.mxu0 %v564
        %612 = vmatmul.f32.gmra.mxu0 %v594
        %v613 = vpop.f32.mrf.mxu0
        %v614 = vadd.f32 0.0, %v613
        %615 = vdwg.mxu0
        %v616 = vadd.f32 %v563, %v614
        %617 = vst [vmem:[#allocation2] sm:$0xff] %v616
        %p618 = scmp.eq.s32.totalorder %s31, 1
        // Predicated region
        $region85: #{tpu_custom_call.1} parent=51 // pred_check
          %p619 = pneg %p618
        $region86: #{tpu_custom_call.1} parent=51 // pred_check_branch
          %621 = sbr.rel (%p619) target = $region88
        $region87: #{tpu_custom_call.1} parent=51 // pred_region
          %v622 = vld [vmem:[#allocation2] sm:$0xff]
          %v623 = vld [vmem:[#allocation8] sm:$0xff]
          %v624 = vld [vmem:[#allocation8 + $0x8] sm:$0xff]
          %v625 = vld [vmem:[#allocation8 + $0x10] sm:$0xff]
          %v626 = vld [vmem:[#allocation8 + $0x18] sm:$0xff]
          %v627 = vld [vmem:[#allocation8 + $0x20] sm:$0xff]
          %v628 = vld [vmem:[#allocation8 + $0x28] sm:$0xff]
          %v629 = vld [vmem:[#allocation8 + $0x30] sm:$0xff]
          %v630 = vld [vmem:[#allocation8 + $0x38] sm:$0xff]
          %v639 = vrot.slane %v433, 7
          %v640 = vrot.slane %v434, 6
          %v641 = vsel %vm580, %v640, %v639
          %v642 = vrot.slane %v435, 5
          %v643 = vsel %vm582, %v642, %v641
          %v644 = vrot.slane %v436, 4
          %v645 = vsel %vm584, %v644, %v643
          %v646 = vrot.slane %v437, 3
          %v647 = vsel %vm586, %v646, %v645
          %v648 = vrot.slane %v438, 2
          %v649 = vsel %vm588, %v648, %v647
          %v650 = vrot.slane %v439, 1
          %v651 = vsel %vm590, %v650, %v649
          %v652 = vsel %vm592, %v440, %v651
          %v653 = vsel %vm441, %v652, 0
          %655 = vmatpush.msra.mxu0 0.0
          %656 = vmatpush.msra.mxu0 0.0
          %657 = vmatpush.msra.mxu0 0.0
          %658 = vmatpush.msra.mxu0 0.0
          %659 = vmatpush.msra.mxu0 0.0
          %660 = vmatpush.msra.mxu0 0.0
          %661 = vmatpush.msra.mxu0 0.0
          %662 = vmatpush.msra.mxu0 0.0
          %663 = vmatpush.msra.mxu0 %v630
          %664 = vmatpush.msra.mxu0 %v629
          %665 = vmatpush.msra.mxu0 %v628
          %666 = vmatpush.msra.mxu0 %v627
          %667 = vmatpush.msra.mxu0 %v626
          %668 = vmatpush.msra.mxu0 %v625
          %669 = vmatpush.msra.mxu0 %v624
          %670 = vmatpush.msra.mxu0 %v623
          %671 = vmatmul.f32.gmra.mxu0 %v653
          %v672 = vpop.f32.mrf.mxu0
          %v673 = vadd.f32 0.0, %v672
          %674 = vdwg.mxu0
          %v675 = vsub.f32 %v622, %v673
          %v676 = vmul.f32 %v675, 0.00390625
          %v677 = vpack.c.bf16 %v676, %v676
          %v678 = vld [vmem:[#allocation11] sm:$0xff]
          %v679 = vld [vmem:[#allocation11 + $0x8] sm:$0xff]
          %v680 = vld [vmem:[#allocation11 + $0x10] sm:$0xff]
          %v681 = vld [vmem:[#allocation11 + $0x18] sm:$0xff]
          %v682 = vld [vmem:[#allocation11 + $0x20] sm:$0xff]
          %v683 = vld [vmem:[#allocation11 + $0x28] sm:$0xff]
          %v684 = vld [vmem:[#allocation11 + $0x30] sm:$0xff]
          %v685 = vld [vmem:[#allocation11 + $0x38] sm:$0xff]
          %v686 = vld [vmem:[#allocation11 + $0x40] sm:$0xff]
          %v687 = vld [vmem:[#allocation11 + $0x48] sm:$0xff]
          %v688 = vld [vmem:[#allocation11 + $0x50] sm:$0xff]
          %v689 = vld [vmem:[#allocation11 + $0x58] sm:$0xff]
          %v690 = vld [vmem:[#allocation11 + $0x60] sm:$0xff]
          %v691 = vld [vmem:[#allocation11 + $0x68] sm:$0xff]
          %v692 = vld [vmem:[#allocation11 + $0x70] sm:$0xff]
          %v693 = vld [vmem:[#allocation11 + $0x78] sm:$0xff]
          %v694 = vld [vmem:[#allocation11 + $0x80] sm:$0xff]
          %v695 = vld [vmem:[#allocation11 + $0x88] sm:$0xff]
          %v696 = vld [vmem:[#allocation11 + $0x90] sm:$0xff]
          %v697 = vld [vmem:[#allocation11 + $0x98] sm:$0xff]
          %v698 = vld [vmem:[#allocation11 + $0xa0] sm:$0xff]
          %v699 = vld [vmem:[#allocation11 + $0xa8] sm:$0xff]
          %v700 = vld [vmem:[#allocation11 + $0xb0] sm:$0xff]
          %v701 = vld [vmem:[#allocation11 + $0xb8] sm:$0xff]
          %v702 = vld [vmem:[#allocation11 + $0xc0] sm:$0xff]
          %v703 = vld [vmem:[#allocation11 + $0xc8] sm:$0xff]
          %v704 = vld [vmem:[#allocation11 + $0xd0] sm:$0xff]
          %v705 = vld [vmem:[#allocation11 + $0xd8] sm:$0xff]
          %v706 = vld [vmem:[#allocation11 + $0xe0] sm:$0xff]
          %v707 = vld [vmem:[#allocation11 + $0xe8] sm:$0xff]
          %v708 = vld [vmem:[#allocation11 + $0xf0] sm:$0xff]
          %v709 = vld [vmem:[#allocation11 + $0xf8] sm:$0xff]
          %v742 = vunpack.c.l.b16 %v678
          %v743 = vunpack.c.h.b16 %v678
          %v744 = vunpack.c.l.b16 %v679
          %v745 = vunpack.c.h.b16 %v679
          %v746 = vunpack.c.l.b16 %v680
          %v747 = vunpack.c.h.b16 %v680
          %v748 = vunpack.c.l.b16 %v681
          %v749 = vunpack.c.h.b16 %v681
          %v750 = vunpack.c.l.b16 %v682
          %v751 = vunpack.c.h.b16 %v682
          %v752 = vunpack.c.l.b16 %v683
          %v753 = vunpack.c.h.b16 %v683
          %v754 = vunpack.c.l.b16 %v684
          %v755 = vunpack.c.h.b16 %v684
          %v756 = vunpack.c.l.b16 %v685
          %v757 = vunpack.c.h.b16 %v685
          %v758 = vunpack.c.l.b16 %v686
          %v759 = vunpack.c.h.b16 %v686
          %v760 = vunpack.c.l.b16 %v687
          %v761 = vunpack.c.h.b16 %v687
          %v762 = vunpack.c.l.b16 %v688
          %v763 = vunpack.c.h.b16 %v688
          %v764 = vunpack.c.l.b16 %v689
          %v765 = vunpack.c.h.b16 %v689
          %v766 = vunpack.c.l.b16 %v690
          %v767 = vunpack.c.h.b16 %v690
          %v768 = vunpack.c.l.b16 %v691
          %v769 = vunpack.c.h.b16 %v691
          %v770 = vunpack.c.l.b16 %v692
          %v771 = vunpack.c.h.b16 %v692
          %v772 = vunpack.c.l.b16 %v693
          %v773 = vunpack.c.h.b16 %v693
          %v774 = vunpack.c.l.b16 %v694
          %v775 = vunpack.c.h.b16 %v694
          %v776 = vunpack.c.l.b16 %v695
          %v777 = vunpack.c.h.b16 %v695
          %v778 = vunpack.c.l.b16 %v696
          %v779 = vunpack.c.h.b16 %v696
          %v780 = vunpack.c.l.b16 %v697
          %v781 = vunpack.c.h.b16 %v697
          %v782 = vunpack.c.l.b16 %v698
          %v783 = vunpack.c.h.b16 %v698
          %v784 = vunpack.c.l.b16 %v699
          %v785 = vunpack.c.h.b16 %v699
          %v786 = vunpack.c.l.b16 %v700
          %v787 = vunpack.c.h.b16 %v700
          %v788 = vunpack.c.l.b16 %v701
          %v789 = vunpack.c.h.b16 %v701
          %v790 = vunpack.c.l.b16 %v702
          %v791 = vunpack.c.h.b16 %v702
          %v792 = vunpack.c.l.b16 %v703
          %v793 = vunpack.c.h.b16 %v703
          %v794 = vunpack.c.l.b16 %v704
          %v795 = vunpack.c.h.b16 %v704
          %v796 = vunpack.c.l.b16 %v705
          %v797 = vunpack.c.h.b16 %v705
          %v798 = vunpack.c.l.b16 %v706
          %v799 = vunpack.c.h.b16 %v706
          %v800 = vunpack.c.l.b16 %v707
          %v801 = vunpack.c.h.b16 %v707
          %v802 = vunpack.c.l.b16 %v708
          %v803 = vunpack.c.h.b16 %v708
          %v804 = vunpack.c.l.b16 %v709
          %v805 = vunpack.c.h.b16 %v709
          %v806 = vpack.c.b16 %v746, %v742
          %v807 = vpack.c.b16 %v747, %v743
          %v808 = vpack.c.b16 %v748, %v744
          %v809 = vpack.c.b16 %v749, %v745
          %v810 = vpack.c.b16 %v754, %v750
          %v811 = vpack.c.b16 %v755, %v751
          %v812 = vpack.c.b16 %v756, %v752
          %v813 = vpack.c.b16 %v757, %v753
          %v814 = vpack.c.b16 %v762, %v758
          %v815 = vpack.c.b16 %v763, %v759
          %v816 = vpack.c.b16 %v764, %v760
          %v817 = vpack.c.b16 %v765, %v761
          %v818 = vpack.c.b16 %v770, %v766
          %v819 = vpack.c.b16 %v771, %v767
          %v820 = vpack.c.b16 %v772, %v768
          %v821 = vpack.c.b16 %v773, %v769
          %v822 = vpack.c.b16 %v778, %v774
          %v823 = vpack.c.b16 %v779, %v775
          %v824 = vpack.c.b16 %v780, %v776
          %v825 = vpack.c.b16 %v781, %v777
          %v826 = vpack.c.b16 %v786, %v782
          %v827 = vpack.c.b16 %v787, %v783
          %v828 = vpack.c.b16 %v788, %v784
          %v829 = vpack.c.b16 %v789, %v785
          %v830 = vpack.c.b16 %v794, %v790
          %v831 = vpack.c.b16 %v795, %v791
          %v832 = vpack.c.b16 %v796, %v792
          %v833 = vpack.c.b16 %v797, %v793
          %v834 = vpack.c.b16 %v802, %v798
          %v835 = vpack.c.b16 %v803, %v799
          %v836 = vpack.c.b16 %v804, %v800
          %v837 = vpack.c.b16 %v805, %v801
          %870 = vmatpush.bf16.msra.mxu0 %v834
          %871 = vmatpush.bf16.msra.mxu0 %v830
          %872 = vmatpush.bf16.msra.mxu0 %v826
          %873 = vmatpush.bf16.msra.mxu0 %v822
          %874 = vmatpush.bf16.msra.mxu0 %v818
          %875 = vmatpush.bf16.msra.mxu0 %v814
          %876 = vmatpush.bf16.msra.mxu0 %v810
          %877 = vmatpush.bf16.msra.mxu0 %v806
          %878 = vmatmul.bf16.gmra.mxu0 %v677
          %v879 = vpop.f32.mrf.mxu0
          %v880 = vadd.f32 0.0, %v879
          %v881 = vpop.f32.mrf.mxu0
          %882 = vdwg.mxu0
          %883 = vmatpush.bf16.msra.mxu0 %v835
          %884 = vmatpush.bf16.msra.mxu0 %v831
          %885 = vmatpush.bf16.msra.mxu0 %v827
          %886 = vmatpush.bf16.msra.mxu0 %v823
          %887 = vmatpush.bf16.msra.mxu0 %v819
          %888 = vmatpush.bf16.msra.mxu0 %v815
          %889 = vmatpush.bf16.msra.mxu0 %v811
          %890 = vmatpush.bf16.msra.mxu0 %v807
          %891 = vmatmul.bf16.gmra.mxu0 %v677
          %v892 = vpop.f32.mrf.mxu0
          %v893 = vadd.f32 0.0, %v892
          %v894 = vpop.f32.mrf.mxu0
          %895 = vdwg.mxu0
          %896 = vmatpush.bf16.msra.mxu0 %v836
          %897 = vmatpush.bf16.msra.mxu0 %v832
          %898 = vmatpush.bf16.msra.mxu0 %v828
          %899 = vmatpush.bf16.msra.mxu0 %v824
          %900 = vmatpush.bf16.msra.mxu0 %v820
          %901 = vmatpush.bf16.msra.mxu0 %v816
          %902 = vmatpush.bf16.msra.mxu0 %v812
          %903 = vmatpush.bf16.msra.mxu0 %v808
          %904 = vmatmul.bf16.gmra.mxu0 %v677
          %v905 = vpop.f32.mrf.mxu0
          %v906 = vadd.f32 0.0, %v905
          %v907 = vpop.f32.mrf.mxu0
          %908 = vdwg.mxu0
          %909 = vmatpush.bf16.msra.mxu0 %v837
          %910 = vmatpush.bf16.msra.mxu0 %v833
          %911 = vmatpush.bf16.msra.mxu0 %v829
          %912 = vmatpush.bf16.msra.mxu0 %v825
          %913 = vmatpush.bf16.msra.mxu0 %v821
          %914 = vmatpush.bf16.msra.mxu0 %v817
          %915 = vmatpush.bf16.msra.mxu0 %v813
          %916 = vmatpush.bf16.msra.mxu0 %v809
          %917 = vmatmul.bf16.gmra.mxu0 %v677
          %v918 = vpop.f32.mrf.mxu0
          %v919 = vadd.f32 0.0, %v918
          %v920 = vpop.f32.mrf.mxu0
          %921 = vdwg.mxu0
          %v922 = vmul.f32 %v880, 0.5
          %v923 = vmul.f32 %v893, 0.5
          %v924 = vmul.f32 %v906, 0.5
          %v925 = vmul.f32 %v919, 0.5
          %v926 = vmul.f32 %v880, 0.70710677
          %v927 = vmul.f32 %v893, 0.70710677
          %v928 = vmul.f32 %v906, 0.70710677
          %v929 = vmul.f32 %v919, 0.70710677
          %v930 = vand.u32 2147483647, %v926
          %v931 = vand.u32 2147483647, %v927
          %v932 = vand.u32 2147483647, %v928
          %v933 = vand.u32 2147483647, %v929
          %v934 = vmul.f32 %v930, 0.3275911
          %v935 = vmul.f32 %v931, 0.3275911
          %v936 = vmul.f32 %v932, 0.3275911
          %v937 = vmul.f32 %v933, 0.3275911
          %v938 = vadd.f32 %v934, 1.0
          %v939 = vadd.f32 %v935, 1.0
          %v940 = vadd.f32 %v936, 1.0
          %v941 = vadd.f32 %v937, 1.0
          %v942 = vrcp.pop %v938
          %v943 = vmul.f32 %v938, %v942
          %v944 = vsub.f32 1.0, %v943
          %v945 = vmul.f32 %v942, %v944
          %v946 = vadd.f32 %v942, %v945
          %vm947 = vweird.f32 %v938
          %vm948 = vweird.f32 %v942
          %vm949 = vmor %vm947, %vm948
          %v950 = vsel %vm949, %v942, %v946
          %v951 = vand.u32 2147483647, %v938
          %vm952 = vcmp.eq.f32.partialorder %v951, 8.507059e+37
          %v953 = vand.u32 %v938, 2147483648
          %v954 = vor.u32 1.1754944e-38, %v953
          %v955 = vsel %vm952, %v954, %v950
          %v956 = vmul.f32 1.0, %v955
          %v957 = vrcp.pop %v939
          %v958 = vmul.f32 %v939, %v957
          %v959 = vsub.f32 1.0, %v958
          %v960 = vmul.f32 %v957, %v959
          %v961 = vadd.f32 %v957, %v960
          %vm962 = vweird.f32 %v939
          %vm963 = vweird.f32 %v957
          %vm964 = vmor %vm962, %vm963
          %v965 = vsel %vm964, %v957, %v961
          %v966 = vand.u32 2147483647, %v939
          %vm967 = vcmp.eq.f32.partialorder %v966, 8.507059e+37
          %v968 = vand.u32 %v939, 2147483648
          %v969 = vor.u32 1.1754944e-38, %v968
          %v970 = vsel %vm967, %v969, %v965
          %v971 = vmul.f32 1.0, %v970
          %v972 = vrcp.pop %v940
          %v973 = vmul.f32 %v940, %v972
          %v974 = vsub.f32 1.0, %v973
          %v975 = vmul.f32 %v972, %v974
          %v976 = vadd.f32 %v972, %v975
          %vm977 = vweird.f32 %v940
          %vm978 = vweird.f32 %v972
          %vm979 = vmor %vm977, %vm978
          %v980 = vsel %vm979, %v972, %v976
          %v981 = vand.u32 2147483647, %v940
          %vm982 = vcmp.eq.f32.partialorder %v981, 8.507059e+37
          %v983 = vand.u32 %v940, 2147483648
          %v984 = vor.u32 1.1754944e-38, %v983
          %v985 = vsel %vm982, %v984, %v980
          %v986 = vmul.f32 1.0, %v985
          %v987 = vrcp.pop %v941
          %v988 = vmul.f32 %v941, %v987
          %v989 = vsub.f32 1.0, %v988
          %v990 = vmul.f32 %v987, %v989
          %v991 = vadd.f32 %v987, %v990
          %vm992 = vweird.f32 %v941
          %vm993 = vweird.f32 %v987
          %vm994 = vmor %vm992, %vm993
          %v995 = vsel %vm994, %v987, %v991
          %v996 = vand.u32 2147483647, %v941
          %vm997 = vcmp.eq.f32.partialorder %v996, 8.507059e+37
          %v998 = vand.u32 %v941, 2147483648
          %v999 = vor.u32 1.1754944e-38, %v998
          %v1000 = vsel %vm997, %v999, %v995
          %v1001 = vmul.f32 1.0, %v1000
          %v1002 = vmul.f32 %v956, 1.0614054
          %v1003 = vmul.f32 %v971, 1.0614054
          %v1004 = vmul.f32 %v986, 1.0614054
          %v1005 = vmul.f32 %v1001, 1.0614054
          %v1006 = vadd.f32 %v1002, -1.4531521
          %v1007 = vadd.f32 %v1003, -1.4531521
          %v1008 = vadd.f32 %v1004, -1.4531521
          %v1009 = vadd.f32 %v1005, -1.4531521
          %v1010 = vmul.f32 %v1006, %v956
          %v1011 = vmul.f32 %v1007, %v971
          %v1012 = vmul.f32 %v1008, %v986
          %v1013 = vmul.f32 %v1009, %v1001
          %v1014 = vadd.f32 %v1010, 1.4214138
          %v1015 = vadd.f32 %v1011, 1.4214138
          %v1016 = vadd.f32 %v1012, 1.4214138
          %v1017 = vadd.f32 %v1013, 1.4214138
          %v1018 = vmul.f32 %v1014, %v956
          %v1019 = vmul.f32 %v1015, %v971
          %v1020 = vmul.f32 %v1016, %v986
          %v1021 = vmul.f32 %v1017, %v1001
          %v1022 = vadd.f32 %v1018, -0.28449672
          %v1023 = vadd.f32 %v1019, -0.28449672
          %v1024 = vadd.f32 %v1020, -0.28449672
          %v1025 = vadd.f32 %v1021, -0.28449672
          %v1026 = vmul.f32 %v1022, %v956
          %v1027 = vmul.f32 %v1023, %v971
          %v1028 = vmul.f32 %v1024, %v986
          %v1029 = vmul.f32 %v1025, %v1001
          %v1030 = vadd.f32 %v1026, 0.2548296
          %v1031 = vadd.f32 %v1027, 0.2548296
          %v1032 = vadd.f32 %v1028, 0.2548296
          %v1033 = vadd.f32 %v1029, 0.2548296
          %v1034 = vmul.f32 %v1030, %v956
          %v1035 = vmul.f32 %v1031, %v971
          %v1036 = vmul.f32 %v1032, %v986
          %v1037 = vmul.f32 %v1033, %v1001
          %v1038 = vsub.f32 0.0, %v930
          %v1039 = vsub.f32 0.0, %v931
          %v1040 = vsub.f32 0.0, %v932
          %v1041 = vsub.f32 0.0, %v933
          %v1042 = vmul.f32 %v1038, %v930
          %v1043 = vmul.f32 %v1039, %v931
          %v1044 = vmul.f32 %v1040, %v932
          %v1045 = vmul.f32 %v1041, %v933
          %v1046 = vmul.f32 %v1042, 1.442695
          %v1047 = vpow.pop %v1046
          %v1048 = vmul.f32 %v1043, 1.442695
          %v1049 = vpow.pop %v1048
          %v1050 = vmul.f32 %v1044, 1.442695
          %v1051 = vpow.pop %v1050
          %v1052 = vmul.f32 %v1045, 1.442695
          %v1053 = vpow.pop %v1052
          %v1054 = vmul.f32 %v1034, %v1047
          %v1055 = vmul.f32 %v1035, %v1049
          %v1056 = vmul.f32 %v1036, %v1051
          %v1057 = vmul.f32 %v1037, %v1053
          %v1058 = vsub.f32 1.0, %v1054
          %v1059 = vsub.f32 1.0, %v1055
          %v1060 = vsub.f32 1.0, %v1056
          %v1061 = vsub.f32 1.0, %v1057
          %vm1062 = vcmp.ge.f32.partialorder %v926, 0.0
          %vm1063 = vcmp.ge.f32.partialorder %v927, 0.0
          %vm1064 = vcmp.ge.f32.partialorder %v928, 0.0
          %vm1065 = vcmp.ge.f32.partialorder %v929, 0.0
          %v1066 = vsub.f32 0.0, %v1058
          %v1067 = vsub.f32 0.0, %v1059
          %v1068 = vsub.f32 0.0, %v1060
          %v1069 = vsub.f32 0.0, %v1061
          %v1070 = vsel %vm1062, %v1058, %v1066
          %v1071 = vsel %vm1063, %v1059, %v1067
          %v1072 = vsel %vm1064, %v1060, %v1068
          %v1073 = vsel %vm1065, %v1061, %v1069
          %v1074 = vadd.f32 %v1070, 1.0
          %v1075 = vadd.f32 %v1071, 1.0
          %v1076 = vadd.f32 %v1072, 1.0
          %v1077 = vadd.f32 %v1073, 1.0
          %v1078 = vmul.f32 %v922, %v1074
          %v1079 = vmul.f32 %v923, %v1075
          %v1080 = vmul.f32 %v924, %v1076
          %v1081 = vmul.f32 %v925, %v1077
          %v1082 = vpack.c.bf16 %v1078, %v1078
          %v1083 = vpack.c.bf16 %v1079, %v1079
          %v1084 = vpack.c.bf16 %v1080, %v1080
          %v1085 = vpack.c.bf16 %v1081, %v1081
          %v1086 = vld [vmem:[#allocation12] sm:$0xff]
          %v1087 = vld [vmem:[#allocation12 + $0x8] sm:$0xff]
          %v1088 = vld [vmem:[#allocation12 + $0x10] sm:$0xff]
          %v1089 = vld [vmem:[#allocation12 + $0x18] sm:$0xff]
          %v1090 = vld [vmem:[#allocation12 + $0x20] sm:$0xff]
          %v1091 = vld [vmem:[#allocation12 + $0x28] sm:$0xff]
          %v1092 = vld [vmem:[#allocation12 + $0x30] sm:$0xff]
          %v1093 = vld [vmem:[#allocation12 + $0x38] sm:$0xff]
          %v1094 = vld [vmem:[#allocation12 + $0x40] sm:$0xff]
          %v1095 = vld [vmem:[#allocation12 + $0x48] sm:$0xff]
          %v1096 = vld [vmem:[#allocation12 + $0x50] sm:$0xff]
          %v1097 = vld [vmem:[#allocation12 + $0x58] sm:$0xff]
          %v1098 = vld [vmem:[#allocation12 + $0x60] sm:$0xff]
          %v1099 = vld [vmem:[#allocation12 + $0x68] sm:$0xff]
          %v1100 = vld [vmem:[#allocation12 + $0x70] sm:$0xff]
          %v1101 = vld [vmem:[#allocation12 + $0x78] sm:$0xff]
          %v1102 = vld [vmem:[#allocation12 + $0x80] sm:$0xff]
          %v1103 = vld [vmem:[#allocation12 + $0x88] sm:$0xff]
          %v1104 = vld [vmem:[#allocation12 + $0x90] sm:$0xff]
          %v1105 = vld [vmem:[#allocation12 + $0x98] sm:$0xff]
          %v1106 = vld [vmem:[#allocation12 + $0xa0] sm:$0xff]
          %v1107 = vld [vmem:[#allocation12 + $0xa8] sm:$0xff]
          %v1108 = vld [vmem:[#allocation12 + $0xb0] sm:$0xff]
          %v1109 = vld [vmem:[#allocation12 + $0xb8] sm:$0xff]
          %v1110 = vld [vmem:[#allocation12 + $0xc0] sm:$0xff]
          %v1111 = vld [vmem:[#allocation12 + $0xc8] sm:$0xff]
          %v1112 = vld [vmem:[#allocation12 + $0xd0] sm:$0xff]
          %v1113 = vld [vmem:[#allocation12 + $0xd8] sm:$0xff]
          %v1114 = vld [vmem:[#allocation12 + $0xe0] sm:$0xff]
          %v1115 = vld [vmem:[#allocation12 + $0xe8] sm:$0xff]
          %v1116 = vld [vmem:[#allocation12 + $0xf0] sm:$0xff]
          %v1117 = vld [vmem:[#allocation12 + $0xf8] sm:$0xff]
          %v1118 = vld [vmem:[#allocation12 + $0x100] sm:$0xff]
          %v1119 = vld [vmem:[#allocation12 + $0x108] sm:$0xff]
          %v1120 = vld [vmem:[#allocation12 + $0x110] sm:$0xff]
          %v1121 = vld [vmem:[#allocation12 + $0x118] sm:$0xff]
          %v1122 = vld [vmem:[#allocation12 + $0x120] sm:$0xff]
          %v1123 = vld [vmem:[#allocation12 + $0x128] sm:$0xff]
          %v1124 = vld [vmem:[#allocation12 + $0x130] sm:$0xff]
          %v1125 = vld [vmem:[#allocation12 + $0x138] sm:$0xff]
          %v1126 = vld [vmem:[#allocation12 + $0x140] sm:$0xff]
          %v1127 = vld [vmem:[#allocation12 + $0x148] sm:$0xff]
          %v1128 = vld [vmem:[#allocation12 + $0x150] sm:$0xff]
          %v1129 = vld [vmem:[#allocation12 + $0x158] sm:$0xff]
          %v1130 = vld [vmem:[#allocation12 + $0x160] sm:$0xff]
          %v1131 = vld [vmem:[#allocation12 + $0x168] sm:$0xff]
          %v1132 = vld [vmem:[#allocation12 + $0x170] sm:$0xff]
          %v1133 = vld [vmem:[#allocation12 + $0x178] sm:$0xff]
          %v1134 = vld [vmem:[#allocation12 + $0x180] sm:$0xff]
          %v1135 = vld [vmem:[#allocation12 + $0x188] sm:$0xff]
          %v1136 = vld [vmem:[#allocation12 + $0x190] sm:$0xff]
          %v1137 = vld [vmem:[#allocation12 + $0x198] sm:$0xff]
          %v1138 = vld [vmem:[#allocation12 + $0x1a0] sm:$0xff]
          %v1139 = vld [vmem:[#allocation12 + $0x1a8] sm:$0xff]
          %v1140 = vld [vmem:[#allocation12 + $0x1b0] sm:$0xff]
          %v1141 = vld [vmem:[#allocation12 + $0x1b8] sm:$0xff]
          %v1142 = vld [vmem:[#allocation12 + $0x1c0] sm:$0xff]
          %v1143 = vld [vmem:[#allocation12 + $0x1c8] sm:$0xff]
          %v1144 = vld [vmem:[#allocation12 + $0x1d0] sm:$0xff]
          %v1145 = vld [vmem:[#allocation12 + $0x1d8] sm:$0xff]
          %v1146 = vld [vmem:[#allocation12 + $0x1e0] sm:$0xff]
          %v1147 = vld [vmem:[#allocation12 + $0x1e8] sm:$0xff]
          %v1148 = vld [vmem:[#allocation12 + $0x1f0] sm:$0xff]
          %v1149 = vld [vmem:[#allocation12 + $0x1f8] sm:$0xff]
          %v1150 = vld [vmem:[#allocation12 + $0x200] sm:$0xff]
          %v1151 = vld [vmem:[#allocation12 + $0x208] sm:$0xff]
          %v1152 = vld [vmem:[#allocation12 + $0x210] sm:$0xff]
          %v1153 = vld [vmem:[#allocation12 + $0x218] sm:$0xff]
          %v1154 = vld [vmem:[#allocation12 + $0x220] sm:$0xff]
          %v1155 = vld [vmem:[#allocation12 + $0x228] sm:$0xff]
          %v1156 = vld [vmem:[#allocation12 + $0x230] sm:$0xff]
          %v1157 = vld [vmem:[#allocation12 + $0x238] sm:$0xff]
          %v1158 = vld [vmem:[#allocation12 + $0x240] sm:$0xff]
          %v1159 = vld [vmem:[#allocation12 + $0x248] sm:$0xff]
          %v1160 = vld [vmem:[#allocation12 + $0x250] sm:$0xff]
          %v1161 = vld [vmem:[#allocation12 + $0x258] sm:$0xff]
          %v1162 = vld [vmem:[#allocation12 + $0x260] sm:$0xff]
          %v1163 = vld [vmem:[#allocation12 + $0x268] sm:$0xff]
          %v1164 = vld [vmem:[#allocation12 + $0x270] sm:$0xff]
          %v1165 = vld [vmem:[#allocation12 + $0x278] sm:$0xff]
          %v1166 = vld [vmem:[#allocation12 + $0x280] sm:$0xff]
          %v1167 = vld [vmem:[#allocation12 + $0x288] sm:$0xff]
          %v1168 = vld [vmem:[#allocation12 + $0x290] sm:$0xff]
          %v1169 = vld [vmem:[#allocation12 + $0x298] sm:$0xff]
          %v1170 = vld [vmem:[#allocation12 + $0x2a0] sm:$0xff]
          %v1171 = vld [vmem:[#allocation12 + $0x2a8] sm:$0xff]
          %v1172 = vld [vmem:[#allocation12 + $0x2b0] sm:$0xff]
          %v1173 = vld [vmem:[#allocation12 + $0x2b8] sm:$0xff]
          %v1174 = vld [vmem:[#allocation12 + $0x2c0] sm:$0xff]
          %v1175 = vld [vmem:[#allocation12 + $0x2c8] sm:$0xff]
          %v1176 = vld [vmem:[#allocation12 + $0x2d0] sm:$0xff]
          %v1177 = vld [vmem:[#allocation12 + $0x2d8] sm:$0xff]
          %v1178 = vld [vmem:[#allocation12 + $0x2e0] sm:$0xff]
          %v1179 = vld [vmem:[#allocation12 + $0x2e8] sm:$0xff]
          %v1180 = vld [vmem:[#allocation12 + $0x2f0] sm:$0xff]
          %v1181 = vld [vmem:[#allocation12 + $0x2f8] sm:$0xff]
          %v1182 = vld [vmem:[#allocation12 + $0x300] sm:$0xff]
          %v1183 = vld [vmem:[#allocation12 + $0x308] sm:$0xff]
          %v1184 = vld [vmem:[#allocation12 + $0x310] sm:$0xff]
          %v1185 = vld [vmem:[#allocation12 + $0x318] sm:$0xff]
          %v1186 = vld [vmem:[#allocation12 + $0x320] sm:$0xff]
          %v1187 = vld [vmem:[#allocation12 + $0x328] sm:$0xff]
          %v1188 = vld [vmem:[#allocation12 + $0x330] sm:$0xff]
          %v1189 = vld [vmem:[#allocation12 + $0x338] sm:$0xff]
          %v1190 = vld [vmem:[#allocation12 + $0x340] sm:$0xff]
          %v1191 = vld [vmem:[#allocation12 + $0x348] sm:$0xff]
          %v1192 = vld [vmem:[#allocation12 + $0x350] sm:$0xff]
          %v1193 = vld [vmem:[#allocation12 + $0x358] sm:$0xff]
          %v1194 = vld [vmem:[#allocation12 + $0x360] sm:$0xff]
          %v1195 = vld [vmem:[#allocation12 + $0x368] sm:$0xff]
          %v1196 = vld [vmem:[#allocation12 + $0x370] sm:$0xff]
          %v1197 = vld [vmem:[#allocation12 + $0x378] sm:$0xff]
          %v1198 = vld [vmem:[#allocation12 + $0x380] sm:$0xff]
          %v1199 = vld [vmem:[#allocation12 + $0x388] sm:$0xff]
          %v1200 = vld [vmem:[#allocation12 + $0x390] sm:$0xff]
          %v1201 = vld [vmem:[#allocation12 + $0x398] sm:$0xff]
          %v1202 = vld [vmem:[#allocation12 + $0x3a0] sm:$0xff]
          %v1203 = vld [vmem:[#allocation12 + $0x3a8] sm:$0xff]
          %v1204 = vld [vmem:[#allocation12 + $0x3b0] sm:$0xff]
          %v1205 = vld [vmem:[#allocation12 + $0x3b8] sm:$0xff]
          %v1206 = vld [vmem:[#allocation12 + $0x3c0] sm:$0xff]
          %v1207 = vld [vmem:[#allocation12 + $0x3c8] sm:$0xff]
          %v1208 = vld [vmem:[#allocation12 + $0x3d0] sm:$0xff]
          %v1209 = vld [vmem:[#allocation12 + $0x3d8] sm:$0xff]
          %v1210 = vld [vmem:[#allocation12 + $0x3e0] sm:$0xff]
          %v1211 = vld [vmem:[#allocation12 + $0x3e8] sm:$0xff]
          %v1212 = vld [vmem:[#allocation12 + $0x3f0] sm:$0xff]
          %v1213 = vld [vmem:[#allocation12 + $0x3f8] sm:$0xff]
          %v1342 = vunpack.c.l.b16 %v1086
          %v1343 = vunpack.c.h.b16 %v1086
          %v1344 = vunpack.c.l.b16 %v1087
          %v1345 = vunpack.c.h.b16 %v1087
          %v1346 = vunpack.c.l.b16 %v1088
          %v1347 = vunpack.c.h.b16 %v1088
          %v1348 = vunpack.c.l.b16 %v1089
          %v1349 = vunpack.c.h.b16 %v1089
          %v1350 = vunpack.c.l.b16 %v1090
          %v1351 = vunpack.c.h.b16 %v1090
          %v1352 = vunpack.c.l.b16 %v1091
          %v1353 = vunpack.c.h.b16 %v1091
          %v1354 = vunpack.c.l.b16 %v1092
          %v1355 = vunpack.c.h.b16 %v1092
          %v1356 = vunpack.c.l.b16 %v1093
          %v1357 = vunpack.c.h.b16 %v1093
          %v1358 = vunpack.c.l.b16 %v1094
          %v1359 = vunpack.c.h.b16 %v1094
          %v1360 = vunpack.c.l.b16 %v1095
          %v1361 = vunpack.c.h.b16 %v1095
          %v1362 = vunpack.c.l.b16 %v1096
          %v1363 = vunpack.c.h.b16 %v1096
          %v1364 = vunpack.c.l.b16 %v1097
          %v1365 = vunpack.c.h.b16 %v1097
          %v1366 = vunpack.c.l.b16 %v1098
          %v1367 = vunpack.c.h.b16 %v1098
          %v1368 = vunpack.c.l.b16 %v1099
          %v1369 = vunpack.c.h.b16 %v1099
          %v1370 = vunpack.c.l.b16 %v1100
          %v1371 = vunpack.c.h.b16 %v1100
          %v1372 = vunpack.c.l.b16 %v1101
          %v1373 = vunpack.c.h.b16 %v1101
          %v1374 = vunpack.c.l.b16 %v1102
          %v1375 = vunpack.c.h.b16 %v1102
          %v1376 = vunpack.c.l.b16 %v1103
          %v1377 = vunpack.c.h.b16 %v1103
          %v1378 = vunpack.c.l.b16 %v1104
          %v1379 = vunpack.c.h.b16 %v1104
          %v1380 = vunpack.c.l.b16 %v1105
          %v1381 = vunpack.c.h.b16 %v1105
          %v1382 = vunpack.c.l.b16 %v1106
          %v1383 = vunpack.c.h.b16 %v1106
          %v1384 = vunpack.c.l.b16 %v1107
          %v1385 = vunpack.c.h.b16 %v1107
          %v1386 = vunpack.c.l.b16 %v1108
          %v1387 = vunpack.c.h.b16 %v1108
          %v1388 = vunpack.c.l.b16 %v1109
          %v1389 = vunpack.c.h.b16 %v1109
          %v1390 = vunpack.c.l.b16 %v1110
          %v1391 = vunpack.c.h.b16 %v1110
          %v1392 = vunpack.c.l.b16 %v1111
          %v1393 = vunpack.c.h.b16 %v1111
          %v1394 = vunpack.c.l.b16 %v1112
          %v1395 = vunpack.c.h.b16 %v1112
          %v1396 = vunpack.c.l.b16 %v1113
          %v1397 = vunpack.c.h.b16 %v1113
          %v1398 = vunpack.c.l.b16 %v1114
          %v1399 = vunpack.c.h.b16 %v1114
          %v1400 = vunpack.c.l.b16 %v1115
          %v1401 = vunpack.c.h.b16 %v1115
          %v1402 = vunpack.c.l.b16 %v1116
          %v1403 = vunpack.c.h.b16 %v1116
          %v1404 = vunpack.c.l.b16 %v1117
          %v1405 = vunpack.c.h.b16 %v1117
          %v1406 = vunpack.c.l.b16 %v1118
          %v1407 = vunpack.c.h.b16 %v1118
          %v1408 = vunpack.c.l.b16 %v1119
          %v1409 = vunpack.c.h.b16 %v1119
          %v1410 = vunpack.c.l.b16 %v1120
          %v1411 = vunpack.c.h.b16 %v1120
          %v1412 = vunpack.c.l.b16 %v1121
          %v1413 = vunpack.c.h.b16 %v1121
          %v1414 = vunpack.c.l.b16 %v1122
          %v1415 = vunpack.c.h.b16 %v1122
          %v1416 = vunpack.c.l.b16 %v1123
          %v1417 = vunpack.c.h.b16 %v1123
          %v1418 = vunpack.c.l.b16 %v1124
          %v1419 = vunpack.c.h.b16 %v1124
          %v1420 = vunpack.c.l.b16 %v1125
          %v1421 = vunpack.c.h.b16 %v1125
          %v1422 = vunpack.c.l.b16 %v1126
          %v1423 = vunpack.c.h.b16 %v1126
          %v1424 = vunpack.c.l.b16 %v1127
          %v1425 = vunpack.c.h.b16 %v1127
          %v1426 = vunpack.c.l.b16 %v1128
          %v1427 = vunpack.c.h.b16 %v1128
          %v1428 = vunpack.c.l.b16 %v1129
          %v1429 = vunpack.c.h.b16 %v1129
          %v1430 = vunpack.c.l.b16 %v1130
          %v1431 = vunpack.c.h.b16 %v1130
          %v1432 = vunpack.c.l.b16 %v1131
          %v1433 = vunpack.c.h.b16 %v1131
          %v1434 = vunpack.c.l.b16 %v1132
          %v1435 = vunpack.c.h.b16 %v1132
          %v1436 = vunpack.c.l.b16 %v1133
          %v1437 = vunpack.c.h.b16 %v1133
          %v1438 = vunpack.c.l.b16 %v1134
          %v1439 = vunpack.c.h.b16 %v1134
          %v1440 = vunpack.c.l.b16 %v1135
          %v1441 = vunpack.c.h.b16 %v1135
          %v1442 = vunpack.c.l.b16 %v1136
          %v1443 = vunpack.c.h.b16 %v1136
          %v1444 = vunpack.c.l.b16 %v1137
          %v1445 = vunpack.c.h.b16 %v1137
          %v1446 = vunpack.c.l.b16 %v1138
          %v1447 = vunpack.c.h.b16 %v1138
          %v1448 = vunpack.c.l.b16 %v1139
          %v1449 = vunpack.c.h.b16 %v1139
          %v1450 = vunpack.c.l.b16 %v1140
          %v1451 = vunpack.c.h.b16 %v1140
          %v1452 = vunpack.c.l.b16 %v1141
          %v1453 = vunpack.c.h.b16 %v1141
          %v1454 = vunpack.c.l.b16 %v1142
          %v1455 = vunpack.c.h.b16 %v1142
          %v1456 = vunpack.c.l.b16 %v1143
          %v1457 = vunpack.c.h.b16 %v1143
          %v1458 = vunpack.c.l.b16 %v1144
          %v1459 = vunpack.c.h.b16 %v1144
          %v1460 = vunpack.c.l.b16 %v1145
          %v1461 = vunpack.c.h.b16 %v1145
          %v1462 = vunpack.c.l.b16 %v1146
          %v1463 = vunpack.c.h.b16 %v1146
          %v1464 = vunpack.c.l.b16 %v1147
          %v1465 = vunpack.c.h.b16 %v1147
          %v1466 = vunpack.c.l.b16 %v1148
          %v1467 = vunpack.c.h.b16 %v1148
          %v1468 = vunpack.c.l.b16 %v1149
          %v1469 = vunpack.c.h.b16 %v1149
          %v1470 = vunpack.c.l.b16 %v1150
          %v1471 = vunpack.c.h.b16 %v1150
          %v1472 = vunpack.c.l.b16 %v1151
          %v1473 = vunpack.c.h.b16 %v1151
          %v1474 = vunpack.c.l.b16 %v1152
          %v1475 = vunpack.c.h.b16 %v1152
          %v1476 = vunpack.c.l.b16 %v1153
          %v1477 = vunpack.c.h.b16 %v1153
          %v1478 = vunpack.c.l.b16 %v1154
          %v1479 = vunpack.c.h.b16 %v1154
          %v1480 = vunpack.c.l.b16 %v1155
          %v1481 = vunpack.c.h.b16 %v1155
          %v1482 = vunpack.c.l.b16 %v1156
          %v1483 = vunpack.c.h.b16 %v1156
          %v1484 = vunpack.c.l.b16 %v1157
          %v1485 = vunpack.c.h.b16 %v1157
          %v1486 = vunpack.c.l.b16 %v1158
          %v1487 = vunpack.c.h.b16 %v1158
          %v1488 = vunpack.c.l.b16 %v1159
          %v1489 = vunpack.c.h.b16 %v1159
          %v1490 = vunpack.c.l.b16 %v1160
          %v1491 = vunpack.c.h.b16 %v1160
          %v1492 = vunpack.c.l.b16 %v1161
          %v1493 = vunpack.c.h.b16 %v1161
          %v1494 = vunpack.c.l.b16 %v1162
          %v1495 = vunpack.c.h.b16 %v1162
          %v1496 = vunpack.c.l.b16 %v1163
          %v1497 = vunpack.c.h.b16 %v1163
          %v1498 = vunpack.c.l.b16 %v1164
          %v1499 = vunpack.c.h.b16 %v1164
          %v1500 = vunpack.c.l.b16 %v1165
          %v1501 = vunpack.c.h.b16 %v1165
          %v1502 = vunpack.c.l.b16 %v1166
          %v1503 = vunpack.c.h.b16 %v1166
          %v1504 = vunpack.c.l.b16 %v1167
          %v1505 = vunpack.c.h.b16 %v1167
          %v1506 = vunpack.c.l.b16 %v1168
          %v1507 = vunpack.c.h.b16 %v1168
          %v1508 = vunpack.c.l.b16 %v1169
          %v1509 = vunpack.c.h.b16 %v1169
          %v1510 = vunpack.c.l.b16 %v1170
          %v1511 = vunpack.c.h.b16 %v1170
          %v1512 = vunpack.c.l.b16 %v1171
          %v1513 = vunpack.c.h.b16 %v1171
          %v1514 = vunpack.c.l.b16 %v1172
          %v1515 = vunpack.c.h.b16 %v1172
          %v1516 = vunpack.c.l.b16 %v1173
          %v1517 = vunpack.c.h.b16 %v1173
          %v1518 = vunpack.c.l.b16 %v1174
          %v1519 = vunpack.c.h.b16 %v1174
          %v1520 = vunpack.c.l.b16 %v1175
          %v1521 = vunpack.c.h.b16 %v1175
          %v1522 = vunpack.c.l.b16 %v1176
          %v1523 = vunpack.c.h.b16 %v1176
          %v1524 = vunpack.c.l.b16 %v1177
          %v1525 = vunpack.c.h.b16 %v1177
          %v1526 = vunpack.c.l.b16 %v1178
          %v1527 = vunpack.c.h.b16 %v1178
          %v1528 = vunpack.c.l.b16 %v1179
          %v1529 = vunpack.c.h.b16 %v1179
          %v1530 = vunpack.c.l.b16 %v1180
          %v1531 = vunpack.c.h.b16 %v1180
          %v1532 = vunpack.c.l.b16 %v1181
          %v1533 = vunpack.c.h.b16 %v1181
          %v1534 = vunpack.c.l.b16 %v1182
          %v1535 = vunpack.c.h.b16 %v1182
          %v1536 = vunpack.c.l.b16 %v1183
          %v1537 = vunpack.c.h.b16 %v1183
          %v1538 = vunpack.c.l.b16 %v1184
          %v1539 = vunpack.c.h.b16 %v1184
          %v1540 = vunpack.c.l.b16 %v1185
          %v1541 = vunpack.c.h.b16 %v1185
          %v1542 = vunpack.c.l.b16 %v1186
          %v1543 = vunpack.c.h.b16 %v1186
          %v1544 = vunpack.c.l.b16 %v1187
          %v1545 = vunpack.c.h.b16 %v1187
          %v1546 = vunpack.c.l.b16 %v1188
          %v1547 = vunpack.c.h.b16 %v1188
          %v1548 = vunpack.c.l.b16 %v1189
          %v1549 = vunpack.c.h.b16 %v1189
          %v1550 = vunpack.c.l.b16 %v1190
          %v1551 = vunpack.c.h.b16 %v1190
          %v1552 = vunpack.c.l.b16 %v1191
          %v1553 = vunpack.c.h.b16 %v1191
          %v1554 = vunpack.c.l.b16 %v1192
          %v1555 = vunpack.c.h.b16 %v1192
          %v1556 = vunpack.c.l.b16 %v1193
          %v1557 = vunpack.c.h.b16 %v1193
          %v1558 = vunpack.c.l.b16 %v1194
          %v1559 = vunpack.c.h.b16 %v1194
          %v1560 = vunpack.c.l.b16 %v1195
          %v1561 = vunpack.c.h.b16 %v1195
          %v1562 = vunpack.c.l.b16 %v1196
          %v1563 = vunpack.c.h.b16 %v1196
          %v1564 = vunpack.c.l.b16 %v1197
          %v1565 = vunpack.c.h.b16 %v1197
          %v1566 = vunpack.c.l.b16 %v1198
          %v1567 = vunpack.c.h.b16 %v1198
          %v1568 = vunpack.c.l.b16 %v1199
          %v1569 = vunpack.c.h.b16 %v1199
          %v1570 = vunpack.c.l.b16 %v1200
          %v1571 = vunpack.c.h.b16 %v1200
          %v1572 = vunpack.c.l.b16 %v1201
          %v1573 = vunpack.c.h.b16 %v1201
          %v1574 = vunpack.c.l.b16 %v1202
          %v1575 = vunpack.c.h.b16 %v1202
          %v1576 = vunpack.c.l.b16 %v1203
          %v1577 = vunpack.c.h.b16 %v1203
          %v1578 = vunpack.c.l.b16 %v1204
          %v1579 = vunpack.c.h.b16 %v1204
          %v1580 = vunpack.c.l.b16 %v1205
          %v1581 = vunpack.c.h.b16 %v1205
          %v1582 = vunpack.c.l.b16 %v1206
          %v1583 = vunpack.c.h.b16 %v1206
          %v1584 = vunpack.c.l.b16 %v1207
          %v1585 = vunpack.c.h.b16 %v1207
          %v1586 = vunpack.c.l.b16 %v1208
          %v1587 = vunpack.c.h.b16 %v1208
          %v1588 = vunpack.c.l.b16 %v1209
          %v1589 = vunpack.c.h.b16 %v1209
          %v1590 = vunpack.c.l.b16 %v1210
          %v1591 = vunpack.c.h.b16 %v1210
          %v1592 = vunpack.c.l.b16 %v1211
          %v1593 = vunpack.c.h.b16 %v1211
          %v1594 = vunpack.c.l.b16 %v1212
          %v1595 = vunpack.c.h.b16 %v1212
          %v1596 = vunpack.c.l.b16 %v1213
          %v1597 = vunpack.c.h.b16 %v1213
          %v1598 = vpack.c.b16 %v1346, %v1342
          %v1599 = vpack.c.b16 %v1347, %v1343
          %v1600 = vpack.c.b16 %v1348, %v1344
          %v1601 = vpack.c.b16 %v1349, %v1345
          %v1602 = vpack.c.b16 %v1354, %v1350
          %v1603 = vpack.c.b16 %v1355, %v1351
          %v1604 = vpack.c.b16 %v1356, %v1352
          %v1605 = vpack.c.b16 %v1357, %v1353
          %v1606 = vpack.c.b16 %v1362, %v1358
          %v1607 = vpack.c.b16 %v1363, %v1359
          %v1608 = vpack.c.b16 %v1364, %v1360
          %v1609 = vpack.c.b16 %v1365, %v1361
          %v1610 = vpack.c.b16 %v1370, %v1366
          %v1611 = vpack.c.b16 %v1371, %v1367
          %v1612 = vpack.c.b16 %v1372, %v1368
          %v1613 = vpack.c.b16 %v1373, %v1369
          %v1614 = vpack.c.b16 %v1378, %v1374
          %v1615 = vpack.c.b16 %v1379, %v1375
          %v1616 = vpack.c.b16 %v1380, %v1376
          %v1617 = vpack.c.b16 %v1381, %v1377
          %v1618 = vpack.c.b16 %v1386, %v1382
          %v1619 = vpack.c.b16 %v1387, %v1383
          %v1620 = vpack.c.b16 %v1388, %v1384
          %v1621 = vpack.c.b16 %v1389, %v1385
          %v1622 = vpack.c.b16 %v1394, %v1390
          %v1623 = vpack.c.b16 %v1395, %v1391
          %v1624 = vpack.c.b16 %v1396, %v1392
          %v1625 = vpack.c.b16 %v1397, %v1393
          %v1626 = vpack.c.b16 %v1402, %v1398
          %v1627 = vpack.c.b16 %v1403, %v1399
          %v1628 = vpack.c.b16 %v1404, %v1400
          %v1629 = vpack.c.b16 %v1405, %v1401
          %v1630 = vpack.c.b16 %v1410, %v1406
          %v1631 = vpack.c.b16 %v1411, %v1407
          %v1632 = vpack.c.b16 %v1412, %v1408
          %v1633 = vpack.c.b16 %v1413, %v1409
          %v1634 = vpack.c.b16 %v1418, %v1414
          %v1635 = vpack.c.b16 %v1419, %v1415
          %v1636 = vpack.c.b16 %v1420, %v1416
          %v1637 = vpack.c.b16 %v1421, %v1417
          %v1638 = vpack.c.b16 %v1426, %v1422
          %v1639 = vpack.c.b16 %v1427, %v1423
          %v1640 = vpack.c.b16 %v1428, %v1424
          %v1641 = vpack.c.b16 %v1429, %v1425
          %v1642 = vpack.c.b16 %v1434, %v1430
          %v1643 = vpack.c.b16 %v1435, %v1431
          %v1644 = vpack.c.b16 %v1436, %v1432
          %v1645 = vpack.c.b16 %v1437, %v1433
          %v1646 = vpack.c.b16 %v1442, %v1438
          %v1647 = vpack.c.b16 %v1443, %v1439
          %v1648 = vpack.c.b16 %v1444, %v1440
          %v1649 = vpack.c.b16 %v1445, %v1441
          %v1650 = vpack.c.b16 %v1450, %v1446
          %v1651 = vpack.c.b16 %v1451, %v1447
          %v1652 = vpack.c.b16 %v1452, %v1448
          %v1653 = vpack.c.b16 %v1453, %v1449
          %v1654 = vpack.c.b16 %v1458, %v1454
          %v1655 = vpack.c.b16 %v1459, %v1455
          %v1656 = vpack.c.b16 %v1460, %v1456
          %v1657 = vpack.c.b16 %v1461, %v1457
          %v1658 = vpack.c.b16 %v1466, %v1462
          %v1659 = vpack.c.b16 %v1467, %v1463
          %v1660 = vpack.c.b16 %v1468, %v1464
          %v1661 = vpack.c.b16 %v1469, %v1465
          %v1662 = vpack.c.b16 %v1474, %v1470
          %v1663 = vpack.c.b16 %v1475, %v1471
          %v1664 = vpack.c.b16 %v1476, %v1472
          %v1665 = vpack.c.b16 %v1477, %v1473
          %v1666 = vpack.c.b16 %v1482, %v1478
          %v1667 = vpack.c.b16 %v1483, %v1479
          %v1668 = vpack.c.b16 %v1484, %v1480
          %v1669 = vpack.c.b16 %v1485, %v1481
          %v1670 = vpack.c.b16 %v1490, %v1486
          %v1671 = vpack.c.b16 %v1491, %v1487
          %v1672 = vpack.c.b16 %v1492, %v1488
          %v1673 = vpack.c.b16 %v1493, %v1489
          %v1674 = vpack.c.b16 %v1498, %v1494
          %v1675 = vpack.c.b16 %v1499, %v1495
          %v1676 = vpack.c.b16 %v1500, %v1496
          %v1677 = vpack.c.b16 %v1501, %v1497
          %v1678 = vpack.c.b16 %v1506, %v1502
          %v1679 = vpack.c.b16 %v1507, %v1503
          %v1680 = vpack.c.b16 %v1508, %v1504
          %v1681 = vpack.c.b16 %v1509, %v1505
          %v1682 = vpack.c.b16 %v1514, %v1510
          %v1683 = vpack.c.b16 %v1515, %v1511
          %v1684 = vpack.c.b16 %v1516, %v1512
          %v1685 = vpack.c.b16 %v1517, %v1513
          %v1686 = vpack.c.b16 %v1522, %v1518
          %v1687 = vpack.c.b16 %v1523, %v1519
          %v1688 = vpack.c.b16 %v1524, %v1520
          %v1689 = vpack.c.b16 %v1525, %v1521
          %v1690 = vpack.c.b16 %v1530, %v1526
          %v1691 = vpack.c.b16 %v1531, %v1527
          %v1692 = vpack.c.b16 %v1532, %v1528
          %v1693 = vpack.c.b16 %v1533, %v1529
          %v1694 = vpack.c.b16 %v1538, %v1534
          %v1695 = vpack.c.b16 %v1539, %v1535
          %v1696 = vpack.c.b16 %v1540, %v1536
          %v1697 = vpack.c.b16 %v1541, %v1537
          %v1698 = vpack.c.b16 %v1546, %v1542
          %v1699 = vpack.c.b16 %v1547, %v1543
          %v1700 = vpack.c.b16 %v1548, %v1544
          %v1701 = vpack.c.b16 %v1549, %v1545
          %v1702 = vpack.c.b16 %v1554, %v1550
          %v1703 = vpack.c.b16 %v1555, %v1551
          %v1704 = vpack.c.b16 %v1556, %v1552
          %v1705 = vpack.c.b16 %v1557, %v1553
          %v1706 = vpack.c.b16 %v1562, %v1558
          %v1707 = vpack.c.b16 %v1563, %v1559
          %v1708 = vpack.c.b16 %v1564, %v1560
          %v1709 = vpack.c.b16 %v1565, %v1561
          %v1710 = vpack.c.b16 %v1570, %v1566
          %v1711 = vpack.c.b16 %v1571, %v1567
          %v1712 = vpack.c.b16 %v1572, %v1568
          %v1713 = vpack.c.b16 %v1573, %v1569
          %v1714 = vpack.c.b16 %v1578, %v1574
          %v1715 = vpack.c.b16 %v1579, %v1575
          %v1716 = vpack.c.b16 %v1580, %v1576
          %v1717 = vpack.c.b16 %v1581, %v1577
          %v1718 = vpack.c.b16 %v1586, %v1582
          %v1719 = vpack.c.b16 %v1587, %v1583
          %v1720 = vpack.c.b16 %v1588, %v1584
          %v1721 = vpack.c.b16 %v1589, %v1585
          %v1722 = vpack.c.b16 %v1594, %v1590
          %v1723 = vpack.c.b16 %v1595, %v1591
          %v1724 = vpack.c.b16 %v1596, %v1592
          %v1725 = vpack.c.b16 %v1597, %v1593
          %1854 = vmatpush.bf16.msra.mxu0 %v1626
          %1855 = vmatpush.bf16.msra.mxu0 %v1622
          %1856 = vmatpush.bf16.msra.mxu0 %v1618
          %1857 = vmatpush.bf16.msra.mxu0 %v1614
          %1858 = vmatpush.bf16.msra.mxu0 %v1610
          %1859 = vmatpush.bf16.msra.mxu0 %v1606
          %1860 = vmatpush.bf16.msra.mxu0 %v1602
          %1861 = vmatpush.bf16.msra.mxu0 %v1598
          %1862 = vmatmul.bf16.gmra.mxu0 %v1082
          %v1863 = vpop.f32.mrf.mxu0
          %v1864 = vadd.f32 0.0, %v1863
          %v1865 = vpop.f32.mrf.mxu0
          %1866 = vdwg.mxu0
          %1867 = vmatpush.bf16.msra.mxu0 %v1658
          %1868 = vmatpush.bf16.msra.mxu0 %v1654
          %1869 = vmatpush.bf16.msra.mxu0 %v1650
          %1870 = vmatpush.bf16.msra.mxu0 %v1646
          %1871 = vmatpush.bf16.msra.mxu0 %v1642
          %1872 = vmatpush.bf16.msra.mxu0 %v1638
          %1873 = vmatpush.bf16.msra.mxu0 %v1634
          %1874 = vmatpush.bf16.msra.mxu0 %v1630
          %1875 = vmatmul.bf16.gmra.mxu0 %v1083
          %v1876 = vpop.f32.mrf.mxu0
          %v1877 = vadd.f32 %v1864, %v1876
          %v1878 = vpop.f32.mrf.mxu0
          %1879 = vdwg.mxu0
          %1880 = vmatpush.bf16.msra.mxu0 %v1690
          %1881 = vmatpush.bf16.msra.mxu0 %v1686
          %1882 = vmatpush.bf16.msra.mxu0 %v1682
          %1883 = vmatpush.bf16.msra.mxu0 %v1678
          %1884 = vmatpush.bf16.msra.mxu0 %v1674
          %1885 = vmatpush.bf16.msra.mxu0 %v1670
          %1886 = vmatpush.bf16.msra.mxu0 %v1666
          %1887 = vmatpush.bf16.msra.mxu0 %v1662
          %1888 = vmatmul.bf16.gmra.mxu0 %v1084
          %v1889 = vpop.f32.mrf.mxu0
          %v1890 = vadd.f32 %v1877, %v1889
          %v1891 = vpop.f32.mrf.mxu0
          %1892 = vdwg.mxu0
          %1893 = vmatpush.bf16.msra.mxu0 %v1722
          %1894 = vmatpush.bf16.msra.mxu0 %v1718
          %1895 = vmatpush.bf16.msra.mxu0 %v1714
          %1896 = vmatpush.bf16.msra.mxu0 %v1710
          %1897 = vmatpush.bf16.msra.mxu0 %v1706
          %1898 = vmatpush.bf16.msra.mxu0 %v1702
          %1899 = vmatpush.bf16.msra.mxu0 %v1698
          %1900 = vmatpush.bf16.msra.mxu0 %v1694
          %1901 = vmatmul.bf16.gmra.mxu0 %v1085
          %v1902 = vpop.f32.mrf.mxu0
          %v1903 = vadd.f32 %v1890, %v1902
          %v1904 = vpop.f32.mrf.mxu0
          %1905 = vdwg.mxu0
          %1906 = vmatpush.bf16.msra.mxu0 %v1627
          %1907 = vmatpush.bf16.msra.mxu0 %v1623
          %1908 = vmatpush.bf16.msra.mxu0 %v1619
          %1909 = vmatpush.bf16.msra.mxu0 %v1615
          %1910 = vmatpush.bf16.msra.mxu0 %v1611
          %1911 = vmatpush.bf16.msra.mxu0 %v1607
          %1912 = vmatpush.bf16.msra.mxu0 %v1603
          %1913 = vmatpush.bf16.msra.mxu0 %v1599
          %1914 = vmatmul.bf16.gmra.mxu0 %v1082
          %v1915 = vpop.f32.mrf.mxu0
          %v1916 = vadd.f32 0.0, %v1915
          %v1917 = vpop.f32.mrf.mxu0
          %1918 = vdwg.mxu0
          %1919 = vmatpush.bf16.msra.mxu0 %v1659
          %1920 = vmatpush.bf16.msra.mxu0 %v1655
          %1921 = vmatpush.bf16.msra.mxu0 %v1651
          %1922 = vmatpush.bf16.msra.mxu0 %v1647
          %1923 = vmatpush.bf16.msra.mxu0 %v1643
          %1924 = vmatpush.bf16.msra.mxu0 %v1639
          %1925 = vmatpush.bf16.msra.mxu0 %v1635
          %1926 = vmatpush.bf16.msra.mxu0 %v1631
          %1927 = vmatmul.bf16.gmra.mxu0 %v1083
          %v1928 = vpop.f32.mrf.mxu0
          %v1929 = vadd.f32 %v1916, %v1928
          %v1930 = vpop.f32.mrf.mxu0
          %1931 = vdwg.mxu0
          %1932 = vmatpush.bf16.msra.mxu0 %v1691
          %1933 = vmatpush.bf16.msra.mxu0 %v1687
          %1934 = vmatpush.bf16.msra.mxu0 %v1683
          %1935 = vmatpush.bf16.msra.mxu0 %v1679
          %1936 = vmatpush.bf16.msra.mxu0 %v1675
          %1937 = vmatpush.bf16.msra.mxu0 %v1671
          %1938 = vmatpush.bf16.msra.mxu0 %v1667
          %1939 = vmatpush.bf16.msra.mxu0 %v1663
          %1940 = vmatmul.bf16.gmra.mxu0 %v1084
          %v1941 = vpop.f32.mrf.mxu0
          %v1942 = vadd.f32 %v1929, %v1941
          %v1943 = vpop.f32.mrf.mxu0
          %1944 = vdwg.mxu0
          %1945 = vmatpush.bf16.msra.mxu0 %v1723
          %1946 = vmatpush.bf16.msra.mxu0 %v1719
          %1947 = vmatpush.bf16.msra.mxu0 %v1715
          %1948 = vmatpush.bf16.msra.mxu0 %v1711
          %1949 = vmatpush.bf16.msra.mxu0 %v1707
          %1950 = vmatpush.bf16.msra.mxu0 %v1703
          %1951 = vmatpush.bf16.msra.mxu0 %v1699
          %1952 = vmatpush.bf16.msra.mxu0 %v1695
          %1953 = vmatmul.bf16.gmra.mxu0 %v1085
          %v1954 = vpop.f32.mrf.mxu0
          %v1955 = vadd.f32 %v1942, %v1954
          %v1956 = vpop.f32.mrf.mxu0
          %1957 = vdwg.mxu0
          %1958 = vmatpush.bf16.msra.mxu0 %v1628
          %1959 = vmatpush.bf16.msra.mxu0 %v1624
          %1960 = vmatpush.bf16.msra.mxu0 %v1620
          %1961 = vmatpush.bf16.msra.mxu0 %v1616
          %1962 = vmatpush.bf16.msra.mxu0 %v1612
          %1963 = vmatpush.bf16.msra.mxu0 %v1608
          %1964 = vmatpush.bf16.msra.mxu0 %v1604
          %1965 = vmatpush.bf16.msra.mxu0 %v1600
          %1966 = vmatmul.bf16.gmra.mxu0 %v1082
          %v1967 = vpop.f32.mrf.mxu0
          %v1968 = vadd.f32 0.0, %v1967
          %v1969 = vpop.f32.mrf.mxu0
          %1970 = vdwg.mxu0
          %1971 = vmatpush.bf16.msra.mxu0 %v1660
          %1972 = vmatpush.bf16.msra.mxu0 %v1656
          %1973 = vmatpush.bf16.msra.mxu0 %v1652
          %1974 = vmatpush.bf16.msra.mxu0 %v1648
          %1975 = vmatpush.bf16.msra.mxu0 %v1644
          %1976 = vmatpush.bf16.msra.mxu0 %v1640
          %1977 = vmatpush.bf16.msra.mxu0 %v1636
          %1978 = vmatpush.bf16.msra.mxu0 %v1632
          %1979 = vmatmul.bf16.gmra.mxu0 %v1083
          %v1980 = vpop.f32.mrf.mxu0
          %v1981 = vadd.f32 %v1968, %v1980
          %v1982 = vpop.f32.mrf.mxu0
          %1983 = vdwg.mxu0
          %1984 = vmatpush.bf16.msra.mxu0 %v1692
          %1985 = vmatpush.bf16.msra.mxu0 %v1688
          %1986 = vmatpush.bf16.msra.mxu0 %v1684
          %1987 = vmatpush.bf16.msra.mxu0 %v1680
          %1988 = vmatpush.bf16.msra.mxu0 %v1676
          %1989 = vmatpush.bf16.msra.mxu0 %v1672
          %1990 = vmatpush.bf16.msra.mxu0 %v1668
          %1991 = vmatpush.bf16.msra.mxu0 %v1664
          %1992 = vmatmul.bf16.gmra.mxu0 %v1084
          %v1993 = vpop.f32.mrf.mxu0
          %v1994 = vadd.f32 %v1981, %v1993
          %v1995 = vpop.f32.mrf.mxu0
          %1996 = vdwg.mxu0
          %1997 = vmatpush.bf16.msra.mxu0 %v1724
          %1998 = vmatpush.bf16.msra.mxu0 %v1720
          %1999 = vmatpush.bf16.msra.mxu0 %v1716
          %2000 = vmatpush.bf16.msra.mxu0 %v1712
          %2001 = vmatpush.bf16.msra.mxu0 %v1708
          %2002 = vmatpush.bf16.msra.mxu0 %v1704
          %2003 = vmatpush.bf16.msra.mxu0 %v1700
          %2004 = vmatpush.bf16.msra.mxu0 %v1696
          %2005 = vmatmul.bf16.gmra.mxu0 %v1085
          %v2006 = vpop.f32.mrf.mxu0
          %v2007 = vadd.f32 %v1994, %v2006
          %v2008 = vpop.f32.mrf.mxu0
          %2009 = vdwg.mxu0
          %2010 = vmatpush.bf16.msra.mxu0 %v1629
          %2011 = vmatpush.bf16.msra.mxu0 %v1625
          %2012 = vmatpush.bf16.msra.mxu0 %v1621
          %2013 = vmatpush.bf16.msra.mxu0 %v1617
          %2014 = vmatpush.bf16.msra.mxu0 %v1613
          %2015 = vmatpush.bf16.msra.mxu0 %v1609
          %2016 = vmatpush.bf16.msra.mxu0 %v1605
          %2017 = vmatpush.bf16.msra.mxu0 %v1601
          %2018 = vmatmul.bf16.gmra.mxu0 %v1082
          %v2019 = vpop.f32.mrf.mxu0
          %v2020 = vadd.f32 0.0, %v2019
          %v2021 = vpop.f32.mrf.mxu0
          %2022 = vdwg.mxu0
          %2023 = vmatpush.bf16.msra.mxu0 %v1661
          %2024 = vmatpush.bf16.msra.mxu0 %v1657
          %2025 = vmatpush.bf16.msra.mxu0 %v1653
          %2026 = vmatpush.bf16.msra.mxu0 %v1649
          %2027 = vmatpush.bf16.msra.mxu0 %v1645
          %2028 = vmatpush.bf16.msra.mxu0 %v1641
          %2029 = vmatpush.bf16.msra.mxu0 %v1637
          %2030 = vmatpush.bf16.msra.mxu0 %v1633
          %2031 = vmatmul.bf16.gmra.mxu0 %v1083
          %v2032 = vpop.f32.mrf.mxu0
          %v2033 = vadd.f32 %v2020, %v2032
          %v2034 = vpop.f32.mrf.mxu0
          %2035 = vdwg.mxu0
          %2036 = vmatpush.bf16.msra.mxu0 %v1693
          %2037 = vmatpush.bf16.msra.mxu0 %v1689
          %2038 = vmatpush.bf16.msra.mxu0 %v1685
          %2039 = vmatpush.bf16.msra.mxu0 %v1681
          %2040 = vmatpush.bf16.msra.mxu0 %v1677
          %2041 = vmatpush.bf16.msra.mxu0 %v1673
          %2042 = vmatpush.bf16.msra.mxu0 %v1669
          %2043 = vmatpush.bf16.msra.mxu0 %v1665
          %2044 = vmatmul.bf16.gmra.mxu0 %v1084
          %v2045 = vpop.f32.mrf.mxu0
          %v2046 = vadd.f32 %v2033, %v2045
          %v2047 = vpop.f32.mrf.mxu0
          %2048 = vdwg.mxu0
          %2049 = vmatpush.bf16.msra.mxu0 %v1725
          %2050 = vmatpush.bf16.msra.mxu0 %v1721
          %2051 = vmatpush.bf16.msra.mxu0 %v1717
          %2052 = vmatpush.bf16.msra.mxu0 %v1713
          %2053 = vmatpush.bf16.msra.mxu0 %v1709
          %2054 = vmatpush.bf16.msra.mxu0 %v1705
          %2055 = vmatpush.bf16.msra.mxu0 %v1701
          %2056 = vmatpush.bf16.msra.mxu0 %v1697
          %2057 = vmatmul.bf16.gmra.mxu0 %v1085
          %v2058 = vpop.f32.mrf.mxu0
          %v2059 = vadd.f32 %v2046, %v2058
          %v2060 = vpop.f32.mrf.mxu0
          %2061 = vdwg.mxu0
          %v2062 = vadd.f32 %v880, %v1903
          %v2063 = vadd.f32 %v893, %v1955
          %v2064 = vadd.f32 %v906, %v2007
          %v2065 = vadd.f32 %v919, %v2059
          %v2066 = vadd.f32 %v2062, %v2063
          %v2067 = vadd.f32 %v2066, %v2064
          %v2068 = vadd.f32 %v2067, %v2065
          %2069 = vadd.xlane.f32.xlu0 %v2068
          %v2070 = vpop.xlane.xlu0 %2069
          %v2071 = vrcp.pop 512.0
          %v2072 = vmul.f32 512.0, %v2071
          %v2073 = vsub.f32 1.0, %v2072
          %v2074 = vmul.f32 %v2071, %v2073
          %v2075 = vadd.f32 %v2071, %v2074
          %vm2076 = vweird.f32 %v2071
          %v2077 = vsel %vm2076, %v2071, %v2075
          %v2078 = vmul.f32 %v2070, %v2077
          %v2079 = vsub.f32 %v2062, %v2078
          %v2080 = vsub.f32 %v2063, %v2078
          %v2081 = vsub.f32 %v2064, %v2078
          %v2082 = vsub.f32 %v2065, %v2078
          %v2083 = vmul.f32 %v2079, %v2079
          %v2084 = vmul.f32 %v2080, %v2080
          %v2085 = vmul.f32 %v2081, %v2081
          %v2086 = vmul.f32 %v2082, %v2082
          %v2087 = vadd.f32 %v2083, %v2084
          %v2088 = vadd.f32 %v2087, %v2085
          %v2089 = vadd.f32 %v2088, %v2086
          %2090 = vadd.xlane.f32.xlu0 %v2089
          %v2091 = vpop.xlane.xlu0 %2090
          %v2092 = vmul.f32 %v2091, %v2077
          %v2093 = vadd.f32 %v2092, 1e-05
          %v2094 = vrsqrt.pop %v2093
          %v2095 = vmul.f32 %v2094, %v2093
          %v2096 = vmul.f32 %v2095, %v2094
          %v2097 = vmul.f32 0.5, %v2096
          %v2098 = vsub.f32 1.5, %v2097
          %v2099 = vmul.f32 %v2094, %v2098
          %vm2100 = vweird.f32 %v2093
          %vm2101 = vweird.f32 %v2094
          %vm2102 = vmor %vm2100, %vm2101
          %v2103 = vsel %vm2102, %v2094, %v2099
          %v2104 = vmul.f32 %v2079, %v2103
          %v2105 = vmul.f32 %v2080, %v2103
          %v2106 = vmul.f32 %v2081, %v2103
          %v2107 = vmul.f32 %v2082, %v2103
          %v2108 = vld [vmem:[%s6] sm:$0xf]
          %v2110 = vperm.slane %v2108, 0
          %v2111 = vperm.slane %v2108, 1
          %v2112 = vperm.slane %v2108, 2
          %v2113 = vperm.slane %v2108, 3
          %v2118 = vmul.f32 %v2104, %v2110
          %v2119 = vmul.f32 %v2105, %v2111
          %v2120 = vmul.f32 %v2106, %v2112
          %v2121 = vmul.f32 %v2107, %v2113
          %v2122 = vld [vmem:[#allocation14] sm:$0xf]
          %v2124 = vperm.slane %v2122, 0
          %v2125 = vperm.slane %v2122, 1
          %v2126 = vperm.slane %v2122, 2
          %v2127 = vperm.slane %v2122, 3
          %v2132 = vadd.f32 %v2118, %v2124
          %v2133 = vadd.f32 %v2119, %v2125
          %v2134 = vadd.f32 %v2120, %v2126
          %v2135 = vadd.f32 %v2121, %v2127
          %v2136 = vmul.f32 %v2132, %v2132
          %v2137 = vmul.f32 %v2133, %v2133
          %v2138 = vmul.f32 %v2134, %v2134
          %v2139 = vmul.f32 %v2135, %v2135
          %v2140 = vadd.f32 %v2136, %v2137
          %v2141 = vadd.f32 %v2140, %v2138
          %v2142 = vadd.f32 %v2141, %v2139
          %2143 = vadd.xlane.f32.xlu0 %v2142
          %v2144 = vpop.xlane.xlu0 %2143
          %v2145 = vrsqrt.pop %v2144
          %v2146 = vmul.f32 %v2145, %v2144
          %v2147 = vmul.f32 %v2146, %v2145
          %v2148 = vmul.f32 0.5, %v2147
          %v2149 = vsub.f32 1.5, %v2148
          %v2150 = vmul.f32 %v2145, %v2149
          %v2151 = vmul.f32 %v2144, %v2150
          %vm2152 = vcmp.eq.f32.partialorder %v2144, inf
          %v2153 = vsel %vm2152, %v2144, %v2151
          %vm2154 = vcmp.eq.f32.partialorder %v2144, 0.0
          %v2155 = vand.u32 %v2144, 2147483648
          %v2156 = vsel %vm2154, %v2155, %v2153
          %v2157 = vmax.f32 %v2156, 1e-12
          %v2158 = vrcp.pop %v2157
          %v2159 = vmul.f32 %v2157, %v2158
          %v2160 = vsub.f32 1.0, %v2159
          %v2161 = vmul.f32 %v2158, %v2160
          %v2162 = vadd.f32 %v2158, %v2161
          %vm2163 = vweird.f32 %v2157
          %vm2164 = vweird.f32 %v2158
          %vm2165 = vmor %vm2163, %vm2164
          %v2166 = vsel %vm2165, %v2158, %v2162
          %v2167 = vand.u32 2147483647, %v2157
          %vm2168 = vcmp.eq.f32.partialorder %v2167, 8.507059e+37
          %v2169 = vand.u32 %v2157, 2147483648
          %v2170 = vor.u32 1.1754944e-38, %v2169
          %v2171 = vsel %vm2168, %v2170, %v2166
          %v2172 = vmul.f32 %v2132, %v2171
          %v2173 = vmul.f32 %v2133, %v2171
          %v2174 = vmul.f32 %v2134, %v2171
          %v2175 = vmul.f32 %v2135, %v2171
          %2176 = vst [vmem:[#allocation15] sm:$0xff] %v2172
          %2177 = vst [vmem:[#allocation15 + $0x8] sm:$0xff] %v2173
          %2178 = vst [vmem:[#allocation15 + $0x10] sm:$0xff] %v2174
          %2179 = vst [vmem:[#allocation15 + $0x18] sm:$0xff] %v2175
        $region88: #{tpu_custom_call.1} parent=51 // pred_fallthru
          _
        // Predicated region
        $region89: #{tpu_custom_call.1} parent=51 // pred_check
          %p2180 = pneg %p231
        $region90: #{tpu_custom_call.1} parent=51 // pred_check_branch
          %2182 = sbr.rel (%p2180) target = $region92
        $region91: #{tpu_custom_call.1} parent=51 // pred_region
          %2184 = vsyncadd [#allocation5], 0
          %s2185 = smul.addr %s30, 4
          %s2186 = smul.addr %s2185, 8
          %s2187 = scalar_lea.hbm %s8, %s2186
          %s2189 = sshll.u32 [#allocation15], 4
          %s2190 = int_to_ptr.vmem [resolvable:$true] %s2189
          %s2191 = sshll.u32 %s2187, 4
          %s2192 = int_to_ptr.hbm [resolvable:$true] %s2191
          %2194 = dma.vmem_to_hbm [thread:$0]  %s2190, 512, %s2192, [#allocation5]
        $region92: #{tpu_custom_call.1} parent=51 // pred_fallthru
          _
        // Predicated region
        $region93: #{tpu_custom_call.1} parent=51 // pred_check
          %p2195 = pneg %p231
        $region94: #{tpu_custom_call.1} parent=51 // pred_check_branch
          %2197 = sbr.rel (%p2195) target = $region96
        $region95: #{tpu_custom_call.1} parent=51 // pred_region
          %2199 = dma.done [#allocation5], 512
        $region96: #{tpu_custom_call.1} parent=51 // pred_fallthru
          _
      $region52: #{tpu_custom_call.1} parent=5 // pred_fallthru
        _
      %p2200 = scmp.le.s32.totalorder 2, %s21
      // Predicated region
      $region97: #{tpu_custom_call.1} parent=5 // pred_check
        %p2201 = pneg %p2200
      $region98: #{tpu_custom_call.1} parent=5 // pred_check_branch
        %2203 = sbr.rel (%p2201) target = $region100
      $region99: #{tpu_custom_call.1} parent=5 // pred_region
        %s2204 = ssub.s32 %s21, 2
      $region100: #{tpu_custom_call.1} parent=5 // pred_fallthru
        _
    $region6: #{tpu_custom_call.1} parent=1 // loop_footer
      %s25 = sadd.s32 1, %s21
    $region7: #{tpu_custom_call.1} parent=1 // loop_footer_branch
      %20 = sbr.rel target = $region3
    $region8: #{tpu_custom_call.1} parent=1 // loop_exit
      _
    %2205 = vsyncpa [#allocation4], 1
    %s2206 = scalar_lea.sflag [#allocation4], 1
    %2207 = vsyncpa %s2206, 1
    %2208 = vsyncpa [#allocation7], 1
    %2209 = vsyncpa [#allocation10], 1
    %2210 = vsyncpa [#allocation13], 1
    %2211 = vsyncpa [#allocation5], 1
    %s2212 = scalar_lea.sflag [#allocation5], 1
    %2213 = vsyncpa %s2212, 1

</llo_original>
